<compile_context>
chip_gen: v7x
topology: tpu7x:2x2x1
jax: 0.10.0
libtpu: 0.0.40
codegen_flags: <defaults>
</compile_context>

<pallas_src>
import jax
import jax.numpy as jnp
from jax.experimental import pallas as pl
from jax.experimental.pallas import tpu as pltpu


def _round_up(x, m):
    return (x + m - 1) // m * m


def _default_tiling():
    """Pick (band_rows, vmem_limit_bytes) per TPU generation."""
    vmem_cap = 64 * 1024 * 1024
    try:
        vmem_cap = int(getattr(pltpu.get_tpu_info(), "vmem_capacity_bytes",
                               vmem_cap))
    except Exception:
        pass
    if vmem_cap >= 100 * 1024 * 1024:        # v5e / v6e: 128 MiB per core
        return 16, 96 * 1024 * 1024
    return 8, 44 * 1024 * 1024               # v7x: 64 MiB per core


def _upsample_conv_phase_kernel(xm_ref, xh_ref, w_ref, b_ref, o_ref):
    # xm_ref : (1, TH, W+2, Cp)   TH rows of the zero-padded original-res input
    # xh_ref : (1, 2,  W+2, Cp)   2-row bottom halo (next two padded rows)
    # w_ref  : (2, 2, 4*Cp, Co)   per-phase 2x2 weights, rows ordered (a, b, ci)
    # b_ref  : (1, Co)            bias (f32)
    # o_ref  : (1, 4, TH, W, Co)  phase planes; o[., 2*pr+pc, i, j] = y[2i+pr, 2j+pc]
    TH = xm_ref.shape[1]
    W = xm_ref.shape[2] - 2
    Cp = xm_ref.shape[3]
    Co = o_ref.shape[4]

    # (TH+2, W+2, Cp) band of x_pad: main rows + 2-row bottom halo (major concat).
    # TODO(synk): fold band+halo into one overlapping-window BlockSpec
    # (pl.Element row axis) to drop this concat; kept split for lowering safety.
    xb = jnp.concatenate([xm_ref[0], xh_ref[0]], axis=0)

    # The 9 distinct 2x2-conv taps (row/col offsets 0..2), built ONCE per band.
    taps = {}
    for a in range(3):
        for b in range(3):
            taps[(a, b)] = xb[a:a + TH, b:b + W, :].reshape(TH * W, Cp)

    bias = b_ref[...]                                            # (1, Co) f32
    for pr in range(2):
        for pc in range(2):
            # One MXU matmul per phase: (TH*W, 4*Cp) x (4*Cp, Co), f32 accumulate.
            slab = jnp.concatenate(
                [taps[(pr, pc)], taps[(pr, pc + 1)],
                 taps[(pr + 1, pc)], taps[(pr + 1, pc + 1)]], axis=1)
            acc = jnp.dot(slab, w_ref[pr, pc],
                          preferred_element_type=jnp.float32) + bias
            o_ref[0, 2 * pr + pc] = acc.reshape(TH, W, Co).astype(o_ref.dtype)


def upsample_forward(x_nchw, weight, bias, *, band_rows=None,
                     compute_dtype=jnp.bfloat16, out_dtype=None,
                     vmem_limit_bytes=None):
    """Nearest-2x upsample + Conv2d(C, C, 3, stride=1, padding=1).

    x_nchw : (N, C, H, W)  float32 (PyTorch NCHW layout)
    weight : (Cout, Cin, 3, 3) PyTorch OIHW layout, bias: (Cout,)

    Compute is bf16 with f32 accumulation (documented precision choice for
    VQGAN inference).  out_dtype defaults to the input dtype to match the
    PyTorch module; pass jnp.bfloat16 in a bf16 pipeline to halve output HBM
    traffic.
    """
    N, C, H, W = x_nchw.shape
    Cout = weight.shape[0]
    out_dtype = x_nchw.dtype if out_dtype is None else out_dtype

    d_rows, d_vmem = _default_tiling()
    band_rows = d_rows if band_rows is None else band_rows
    vmem_limit_bytes = d_vmem if vmem_limit_bytes is None else vmem_limit_bytes

    TH = max(2, band_rows + (band_rows % 2))     # even row-band size (orig res)
    Hp = _round_up(H, TH)
    n_bands = Hp // TH
    half_band = TH // 2

    Cin_p = _round_up(C, 128)                    # lane-aligned taps / clean K
    Cout_p = _round_up(Cout, 128)                # lane-dense output stores

    # TODO(synk): in an end-to-end NHWC/bf16 pipeline these two wrapper
    # transposes (and the f32 output) disappear; kept only because the module's
    # external layout is NCHW float32.
    x = jnp.transpose(x_nchw.astype(compute_dtype), (0, 2, 3, 1))
    # conv padding=1 at original resolution, + rows to fill the last band,
    # + channel pad to a lane-aligned Cin.
    x_pad = jnp.pad(x, ((0, 0), (1, 1 + Hp - H), (1, 1), (0, Cin_p - C)))

    # Per-phase 2x2 weights: W_eff[pr,pc,a,b,ci,co] = sum over the original
    # (dy,dx) taps that collapse onto original-res pixel (a,b) for that phase.
    w_t = jnp.transpose(weight, (2, 3, 1, 0)).astype(jnp.float32)  # (3,3,Ci,Co)
    comb = jnp.array([[[1., 0., 0.], [0., 1., 1.]],                # pr=0: w0 | w1+w2
                      [[1., 1., 0.], [0., 0., 1.]]],               # pr=1: w0+w1 | w2
                     dtype=jnp.float32)                            # (phase, tap, k)
    w_eff = jnp.einsum('pay,qbx,yxio->pqabio', comb, comb, w_t)    # (2,2,2,2,Ci,Co)
    w_eff = jnp.pad(w_eff, ((0, 0),) * 4 + ((0, Cin_p - C), (0, Cout_p - Cout)))
    wk = w_eff.reshape(2, 2, 4 * Cin_p, Cout_p).astype(compute_dtype)
    bk = jnp.pad(bias, (0, Cout_p - Cout)).astype(jnp.float32).reshape(1, Cout_p)

    out = pl.pallas_call(
        _upsample_conv_phase_kernel,
        out_shape=jax.ShapeDtypeStruct((N, 4, Hp, W, Cout_p), out_dtype),
        grid_spec=pltpu.PrefetchScalarGridSpec(
            num_scalar_prefetch=0,
            grid=(N, n_bands),
            in_specs=[
                # TH-row band of x_pad.
                pl.BlockSpec((1, TH, W + 2, Cin_p), lambda n, i: (n, i, 0, 0)),
                # Exactly the 2 halo rows below the band.
                pl.BlockSpec((1, 2, W + 2, Cin_p),
                             lambda n, i: (n, (i + 1) * half_band, 0, 0)),
                # Full weight block, constant index -> resident, DMA'd once.
                pl.BlockSpec((2, 2, 4 * Cin_p, Cout_p),
                             lambda n, i: (0, 0, 0, 0)),
                pl.BlockSpec((1, Cout_p), lambda n, i: (0, 0)),
            ],
            out_specs=pl.BlockSpec((1, 4, TH, W, Cout_p),
                                   lambda n, i: (n, 0, i, 0, 0)),
        ),
        compiler_params=pltpu.CompilerParams(
            dimension_semantics=("parallel", "parallel"),
            vmem_limit_bytes=vmem_limit_bytes),
    )(x_pad, x_pad, wk, bk)

    # De-interleave the 4 phases inside the NHWC->NCHW transpose we need anyway.
    out = out.reshape(N, 2, 2, Hp, W, Cout_p)[:, :, :, :H, :, :Cout]
    out = jnp.transpose(out, (0, 5, 3, 1, 4, 2)).reshape(N, Cout, 2 * H, 2 * W)
    return out


def _reference(x_nchw, weight, bias):
    """Pure-JAX reference (nearest 2x + lax conv) for correctness checking."""
    x = jnp.repeat(jnp.repeat(x_nchw, 2, axis=2), 2, axis=3)
    y = jax.lax.conv_general_dilated(
        x, weight, window_strides=(1, 1), padding=((1, 1), (1, 1)),
        dimension_numbers=("NCHW", "OIHW", "NCHW"))
    return y + bias[None, :, None, None]


if __name__ == "__main__":
    key = jax.random.PRNGKey(0)
    k_x, k_w, k_b, k_x2, k_w2, k_b2 = jax.random.split(key, 6)

    # --- small shapes consistent with the module ---
    N, C, H, W = 2, 4, 16, 16
    x = jax.random.normal(k_x, (N, C, H, W), dtype=jnp.float32)
    bound = 1.0 / ((C * 9) ** 0.5)
    weight = jax.random.uniform(k_w, (C, C, 3, 3), jnp.float32, -bound, bound)
    bias = jax.random.uniform(k_b, (C,), jnp.float32, -bound, bound)

    out = jax.block_until_ready(upsample_forward(x, weight, bias))
    ref = _reference(x, weight, bias)
    assert out.shape == (N, C, 2 * H, 2 * W), out.shape
    assert jnp.allclose(out, ref, atol=3e-2, rtol=3e-2), \
        float(jnp.max(jnp.abs(out - ref)))

    # --- second check: non-lane-aligned channels (Cin/Cout pad path) and H not
    # a multiple of the row-band size (row-pad path), multiple row bands. ---
    N2, C2, H2, W2 = 1, 160, 12, 8
    x2 = jax.random.normal(k_x2, (N2, C2, H2, W2), dtype=jnp.float32)
    bound2 = 1.0 / ((C2 * 9) ** 0.5)
    w2 = jax.random.uniform(k_w2, (C2, C2, 3, 3), jnp.float32, -bound2, bound2)
    b2 = jax.random.uniform(k_b2, (C2,), jnp.float32, -bound2, bound2)
    out2 = jax.block_until_ready(
        upsample_forward(x2, w2, b2, band_rows=4))       # force multi-band path
    ref2 = _reference(x2, w2, b2)
    assert out2.shape == (N2, C2, 2 * H2, 2 * W2), out2.shape
    assert jnp.allclose(out2, ref2, atol=3e-2, rtol=3e-2), \
        float(jnp.max(jnp.abs(out2 - ref2)))

    print("KERNEL_OK")
</pallas_src>

<mosaic_0001>
module attributes {stable_mosaic.version = 11 : i64} {
  func.func @_upsample_conv_phase_kernel(%arg0: i32, %arg1: i32, %arg2: memref<1x8x18x128xbf16, #tpu.memory_space<vmem>>, %arg3: memref<1x2x18x128xbf16, #tpu.memory_space<vmem>>, %arg4: memref<2x2x512x128xbf16, #tpu.memory_space<vmem>>, %arg5: memref<1x128xf32, #tpu.memory_space<vmem>>, %arg6: memref<1x4x8x16x128xf32, #tpu.memory_space<vmem>>) attributes {dimension_semantics = [#tpu.dimension_semantics<parallel>, #tpu.dimension_semantics<parallel>], iteration_bounds = array<i64: 2, 2>, scalar_prefetch = 0 : i64, scratch_operands = 0 : i64, tpu.core_type = #tpu.core_type<tc>, window_params = [{transform_indices = @transform_0, window_bounds = array<i64: 1, 8, 18, 128>}, {transform_indices = @transform_1, window_bounds = array<i64: 1, 2, 18, 128>}, {pipeline_mode = #tpu.pipeline_mode<synchronous>, transform_indices = @transform_2, window_bounds = array<i64: 2, 2, 512, 128>}, {pipeline_mode = #tpu.pipeline_mode<synchronous>, transform_indices = @transform_3, window_bounds = array<i64: 1, 128>}, {transform_indices = @transform_4, window_bounds = array<i64: 1, 4, 8, 16, 128>}]} {
    %c0 = arith.constant 0 : index
    %c0_0 = arith.constant 0 : index
    %c0_1 = arith.constant 0 : index
    %c0_2 = arith.constant 0 : index
    %0 = vector.load %arg2[%c0, %c0_0, %c0_1, %c0_2] : memref<1x8x18x128xbf16, #tpu.memory_space<vmem>>, vector<1x8x18x128xbf16>
    %1 = vector.shape_cast %0 : vector<1x8x18x128xbf16> to vector<8x18x128xbf16>
    %c0_3 = arith.constant 0 : index
    %c0_4 = arith.constant 0 : index
    %c0_5 = arith.constant 0 : index
    %c0_6 = arith.constant 0 : index
    %2 = vector.load %arg3[%c0_3, %c0_4, %c0_5, %c0_6] : memref<1x2x18x128xbf16, #tpu.memory_space<vmem>>, vector<1x2x18x128xbf16>
    %3 = vector.shape_cast %2 : vector<1x2x18x128xbf16> to vector<2x18x128xbf16>
    %4 = tpu.concatenate %1, %3 in 0 : vector<8x18x128xbf16>, vector<2x18x128xbf16> -> vector<10x18x128xbf16>
    %5 = vector.extract_strided_slice %4 {offsets = [0, 0, 0], sizes = [8, 16, 128], strides = [1, 1, 1]} : vector<10x18x128xbf16> to vector<8x16x128xbf16>
    %6 = vector.shape_cast %5 : vector<8x16x128xbf16> to vector<128x128xbf16>
    %7 = vector.extract_strided_slice %4 {offsets = [0, 1, 0], sizes = [8, 16, 128], strides = [1, 1, 1]} : vector<10x18x128xbf16> to vector<8x16x128xbf16>
    %8 = vector.shape_cast %7 : vector<8x16x128xbf16> to vector<128x128xbf16>
    %9 = vector.extract_strided_slice %4 {offsets = [0, 2, 0], sizes = [8, 16, 128], strides = [1, 1, 1]} : vector<10x18x128xbf16> to vector<8x16x128xbf16>
    %10 = vector.shape_cast %9 : vector<8x16x128xbf16> to vector<128x128xbf16>
    %11 = vector.extract_strided_slice %4 {offsets = [1, 0, 0], sizes = [8, 16, 128], strides = [1, 1, 1]} : vector<10x18x128xbf16> to vector<8x16x128xbf16>
    %12 = vector.shape_cast %11 : vector<8x16x128xbf16> to vector<128x128xbf16>
    %13 = vector.extract_strided_slice %4 {offsets = [1, 1, 0], sizes = [8, 16, 128], strides = [1, 1, 1]} : vector<10x18x128xbf16> to vector<8x16x128xbf16>
    %14 = vector.shape_cast %13 : vector<8x16x128xbf16> to vector<128x128xbf16>
    %15 = vector.extract_strided_slice %4 {offsets = [1, 2, 0], sizes = [8, 16, 128], strides = [1, 1, 1]} : vector<10x18x128xbf16> to vector<8x16x128xbf16>
    %16 = vector.shape_cast %15 : vector<8x16x128xbf16> to vector<128x128xbf16>
    %17 = vector.extract_strided_slice %4 {offsets = [2, 0, 0], sizes = [8, 16, 128], strides = [1, 1, 1]} : vector<10x18x128xbf16> to vector<8x16x128xbf16>
    %18 = vector.shape_cast %17 : vector<8x16x128xbf16> to vector<128x128xbf16>
    %19 = vector.extract_strided_slice %4 {offsets = [2, 1, 0], sizes = [8, 16, 128], strides = [1, 1, 1]} : vector<10x18x128xbf16> to vector<8x16x128xbf16>
    %20 = vector.shape_cast %19 : vector<8x16x128xbf16> to vector<128x128xbf16>
    %21 = vector.extract_strided_slice %4 {offsets = [2, 2, 0], sizes = [8, 16, 128], strides = [1, 1, 1]} : vector<10x18x128xbf16> to vector<8x16x128xbf16>
    %22 = vector.shape_cast %21 : vector<8x16x128xbf16> to vector<128x128xbf16>
    %c0_7 = arith.constant 0 : index
    %c0_8 = arith.constant 0 : index
    %23 = vector.load %arg5[%c0_7, %c0_8] : memref<1x128xf32, #tpu.memory_space<vmem>>, vector<1x128xf32>
    %24 = tpu.concatenate %6, %8, %12, %14 in 1 : vector<128x128xbf16>, vector<128x128xbf16>, vector<128x128xbf16>, vector<128x128xbf16> -> vector<128x512xbf16>
    %c0_9 = arith.constant 0 : index
    %c0_10 = arith.constant 0 : index
    %c0_11 = arith.constant 0 : index
    %c0_12 = arith.constant 0 : index
    %25 = vector.load %arg4[%c0_9, %c0_10, %c0_11, %c0_12] : memref<2x2x512x128xbf16, #tpu.memory_space<vmem>>, vector<1x1x512x128xbf16>
    %26 = vector.shape_cast %25 : vector<1x1x512x128xbf16> to vector<512x128xbf16>
    %cst = arith.constant dense<0.000000e+00> : vector<128x128xf32>
    %27 = tpu.matmul %24, %26, %cst {dimension_numbers = #tpu.dot_dimension_numbers<[1], [0], [0], [1], [0, 0, 1, 1], [], []>} : vector<128x512xbf16>, vector<512x128xbf16>, vector<128x128xf32> -> vector<128x128xf32>
    %28 = vector.broadcast %23 : vector<1x128xf32> to vector<128x128xf32>
    %29 = arith.addf %27, %28 : vector<128x128xf32>
    %30 = vector.shape_cast %29 : vector<128x128xf32> to vector<8x16x128xf32>
    %c0_13 = arith.constant 0 : index
    %c0_14 = arith.constant 0 : index
    %c0_15 = arith.constant 0 : index
    %c0_16 = arith.constant 0 : index
    %c0_17 = arith.constant 0 : index
    %31 = vector.load %arg6[%c0_13, %c0_14, %c0_15, %c0_16, %c0_17] : memref<1x4x8x16x128xf32, #tpu.memory_space<vmem>>, vector<1x1x8x16x128xf32>
    %32 = vector.shape_cast %31 : vector<1x1x8x16x128xf32> to vector<8x16x128xf32>
    %33 = vector.shape_cast %30 : vector<8x16x128xf32> to vector<1x1x8x16x128xf32>
    tpu.vector_store %arg6[%c0_13, %c0_14, %c0_15, %c0_16, %c0_17], %33 {strides = array<i32>} : memref<1x4x8x16x128xf32, #tpu.memory_space<vmem>>, vector<1x1x8x16x128xf32>,
    %34 = tpu.concatenate %8, %10, %14, %16 in 1 : vector<128x128xbf16>, vector<128x128xbf16>, vector<128x128xbf16>, vector<128x128xbf16> -> vector<128x512xbf16>
    %c0_18 = arith.constant 0 : index
    %c1 = arith.constant 1 : index
    %c0_19 = arith.constant 0 : index
    %c0_20 = arith.constant 0 : index
    %35 = vector.load %arg4[%c0_18, %c1, %c0_19, %c0_20] : memref<2x2x512x128xbf16, #tpu.memory_space<vmem>>, vector<1x1x512x128xbf16>
    %36 = vector.shape_cast %35 : vector<1x1x512x128xbf16> to vector<512x128xbf16>
    %cst_21 = arith.constant dense<0.000000e+00> : vector<128x128xf32>
    %37 = tpu.matmul %34, %36, %cst_21 {dimension_numbers = #tpu.dot_dimension_numbers<[1], [0], [0], [1], [0, 0, 1, 1], [], []>} : vector<128x512xbf16>, vector<512x128xbf16>, vector<128x128xf32> -> vector<128x128xf32>
    %38 = vector.broadcast %23 : vector<1x128xf32> to vector<128x128xf32>
    %39 = arith.addf %37, %38 : vector<128x128xf32>
    %40 = vector.shape_cast %39 : vector<128x128xf32> to vector<8x16x128xf32>
    %c0_22 = arith.constant 0 : index
    %c1_23 = arith.constant 1 : index
    %c0_24 = arith.constant 0 : index
    %c0_25 = arith.constant 0 : index
    %c0_26 = arith.constant 0 : index
    %41 = vector.load %arg6[%c0_22, %c1_23, %c0_24, %c0_25, %c0_26] : memref<1x4x8x16x128xf32, #tpu.memory_space<vmem>>, vector<1x1x8x16x128xf32>
    %42 = vector.shape_cast %41 : vector<1x1x8x16x128xf32> to vector<8x16x128xf32>
    %43 = vector.shape_cast %40 : vector<8x16x128xf32> to vector<1x1x8x16x128xf32>
    tpu.vector_store %arg6[%c0_22, %c1_23, %c0_24, %c0_25, %c0_26], %43 {strides = array<i32>} : memref<1x4x8x16x128xf32, #tpu.memory_space<vmem>>, vector<1x1x8x16x128xf32>,
    %44 = tpu.concatenate %12, %14, %18, %20 in 1 : vector<128x128xbf16>, vector<128x128xbf16>, vector<128x128xbf16>, vector<128x128xbf16> -> vector<128x512xbf16>
    %c1_27 = arith.constant 1 : index
    %c0_28 = arith.constant 0 : index
    %c0_29 = arith.constant 0 : index
    %c0_30 = arith.constant 0 : index
    %45 = vector.load %arg4[%c1_27, %c0_28, %c0_29, %c0_30] : memref<2x2x512x128xbf16, #tpu.memory_space<vmem>>, vector<1x1x512x128xbf16>
    %46 = vector.shape_cast %45 : vector<1x1x512x128xbf16> to vector<512x128xbf16>
    %cst_31 = arith.constant dense<0.000000e+00> : vector<128x128xf32>
    %47 = tpu.matmul %44, %46, %cst_31 {dimension_numbers = #tpu.dot_dimension_numbers<[1], [0], [0], [1], [0, 0, 1, 1], [], []>} : vector<128x512xbf16>, vector<512x128xbf16>, vector<128x128xf32> -> vector<128x128xf32>
    %48 = vector.broadcast %23 : vector<1x128xf32> to vector<128x128xf32>
    %49 = arith.addf %47, %48 : vector<128x128xf32>
    %50 = vector.shape_cast %49 : vector<128x128xf32> to vector<8x16x128xf32>
    %c0_32 = arith.constant 0 : index
    %c2 = arith.constant 2 : index
    %c0_33 = arith.constant 0 : index
    %c0_34 = arith.constant 0 : index
    %c0_35 = arith.constant 0 : index
    %51 = vector.load %arg6[%c0_32, %c2, %c0_33, %c0_34, %c0_35] : memref<1x4x8x16x128xf32, #tpu.memory_space<vmem>>, vector<1x1x8x16x128xf32>
    %52 = vector.shape_cast %51 : vector<1x1x8x16x128xf32> to vector<8x16x128xf32>
    %53 = vector.shape_cast %50 : vector<8x16x128xf32> to vector<1x1x8x16x128xf32>
    tpu.vector_store %arg6[%c0_32, %c2, %c0_33, %c0_34, %c0_35], %53 {strides = array<i32>} : memref<1x4x8x16x128xf32, #tpu.memory_space<vmem>>, vector<1x1x8x16x128xf32>,
    %54 = tpu.concatenate %14, %16, %20, %22 in 1 : vector<128x128xbf16>, vector<128x128xbf16>, vector<128x128xbf16>, vector<128x128xbf16> -> vector<128x512xbf16>
    %c1_36 = arith.constant 1 : index
    %c1_37 = arith.constant 1 : index
    %c0_38 = arith.constant 0 : index
    %c0_39 = arith.constant 0 : index
    %55 = vector.load %arg4[%c1_36, %c1_37, %c0_38, %c0_39] : memref<2x2x512x128xbf16, #tpu.memory_space<vmem>>, vector<1x1x512x128xbf16>
    %56 = vector.shape_cast %55 : vector<1x1x512x128xbf16> to vector<512x128xbf16>
    %cst_40 = arith.constant dense<0.000000e+00> : vector<128x128xf32>
    %57 = tpu.matmul %54, %56, %cst_40 {dimension_numbers = #tpu.dot_dimension_numbers<[1], [0], [0], [1], [0, 0, 1, 1], [], []>} : vector<128x512xbf16>, vector<512x128xbf16>, vector<128x128xf32> -> vector<128x128xf32>
    %58 = vector.broadcast %23 : vector<1x128xf32> to vector<128x128xf32>
    %59 = arith.addf %57, %58 : vector<128x128xf32>
    %60 = vector.shape_cast %59 : vector<128x128xf32> to vector<8x16x128xf32>
    %c0_41 = arith.constant 0 : index
    %c3 = arith.constant 3 : index
    %c0_42 = arith.constant 0 : index
    %c0_43 = arith.constant 0 : index
    %c0_44 = arith.constant 0 : index
    %61 = vector.load %arg6[%c0_41, %c3, %c0_42, %c0_43, %c0_44] : memref<1x4x8x16x128xf32, #tpu.memory_space<vmem>>, vector<1x1x8x16x128xf32>
    %62 = vector.shape_cast %61 : vector<1x1x8x16x128xf32> to vector<8x16x128xf32>
    %63 = vector.shape_cast %60 : vector<8x16x128xf32> to vector<1x1x8x16x128xf32>
    tpu.vector_store %arg6[%c0_41, %c3, %c0_42, %c0_43, %c0_44], %63 {strides = array<i32>} : memref<1x4x8x16x128xf32, #tpu.memory_space<vmem>>, vector<1x1x8x16x128xf32>,
    return
  }
  func.func @transform_0(%arg0: i32, %arg1: i32) -> (i32, i32, i32, i32) {
    %c0_i32 = arith.constant 0 : i32
    %c0_i32_0 = arith.constant 0 : i32
    %c0_i32_1 = arith.constant 0 : i32
    return %arg0, %arg1, %c0_i32, %c0_i32_0 : i32, i32, i32, i32
  }
  func.func @transform_1(%arg0: i32, %arg1: i32) -> (i32, i32, i32, i32) {
    %c1_i32 = arith.constant 1 : i32
    %0 = arith.addi %arg1, %c1_i32 : i32
    %c4_i32 = arith.constant 4 : i32
    %1 = arith.muli %0, %c4_i32 : i32
    %c0_i32 = arith.constant 0 : i32
    %c0_i32_0 = arith.constant 0 : i32
    %c0_i32_1 = arith.constant 0 : i32
    return %arg0, %1, %c0_i32, %c0_i32_0 : i32, i32, i32, i32
  }
  func.func @transform_2(%arg0: i32, %arg1: i32) -> (i32, i32, i32, i32) {
    %c0_i32 = arith.constant 0 : i32
    %c0_i32_0 = arith.constant 0 : i32
    %c0_i32_1 = arith.constant 0 : i32
    %c0_i32_2 = arith.constant 0 : i32
    %c0_i32_3 = arith.constant 0 : i32
    return %c0_i32, %c0_i32_0, %c0_i32_1, %c0_i32_2 : i32, i32, i32, i32
  }
  func.func @transform_3(%arg0: i32, %arg1: i32) -> (i32, i32) {
    %c0_i32 = arith.constant 0 : i32
    %c0_i32_0 = arith.constant 0 : i32
    %c0_i32_1 = arith.constant 0 : i32
    return %c0_i32, %c0_i32_0 : i32, i32
  }
  func.func @transform_4(%arg0: i32, %arg1: i32) -> (i32, i32, i32, i32, i32) {
    %c0_i32 = arith.constant 0 : i32
    %c0_i32_0 = arith.constant 0 : i32
    %c0_i32_1 = arith.constant 0 : i32
    %c0_i32_2 = arith.constant 0 : i32
    return %arg0, %c0_i32, %arg1, %c0_i32_0, %c0_i32_1 : i32, i32, i32, i32, i32
  }
}

</mosaic_0001>

<llo_original>
// kernel: tpu_custom_call.1
$region0: #{tpu_custom_call.1}
  #allocation0 [shape = 'u32[]', space=smem, size = 0x4, offset = 0x4, fixed_abs, tag = 'smem constant byte address 0x4 - core index']
  #allocation1 [shape = 'u32[144,128]{1,0:T(1,128)}', space=vmem, size = 0x12000, scoped, tag = 'internal scratch']
  #allocation4 [shape = 's32[]', space=sflag, size = 0x4, offset = 0, fixed_abs, tag = 'sflag constant byte address 0x0 - dummy sync flag']
  %s0 = inlined_call_operand.vmem [shape: bf16[2,18,18,128], index: 0, kind: input, shape index: {}]
  %s1 = inlined_call_operand.vmem [shape: bf16[2,18,18,128], index: 1, kind: input, shape index: {}]
  %s2 = inlined_call_operand.vmem [shape: bf16[2,2,512,128], index: 2, kind: input, shape index: {}]
  %s3 = inlined_call_operand.vmem [shape: f32[1,128], index: 3, kind: input, shape index: {}]
  %s4 = inlined_call_operand.hbm [shape: f32[2,4,16,16,128], index: 4, kind: output, shape index: {}]
  %s5 = sld [smem:[#allocation0]]
  $region49: #{tpu_custom_call.1} parent=0
    _
  %s7 = ssub.s32 1, %s5
  %s8 = scalar_select 0, %s7, %s5
  $region1: #{tpu_custom_call.1} parent=0
    #allocation2 [shape = 'u8[524288]{0}', space=vmem, size = 0x80000, scoped, tag = 'output window, operand 0']
    #allocation3 [shape = 's32[2]{0}', space=sflag, size = 0x8, scoped, tag = 'scoped memory for tpu_custom_call.1']
    %9 = vsyncpa [#allocation3], 0
    %s10 = scalar_lea.sflag [#allocation3], 1
    %11 = vsyncpa %s10, 0
    loop: start=0, step=1, limit=6
    $region2: #{tpu_custom_call.1} parent=1 // loop_pre_header
      _
    $region3: #{tpu_custom_call.1} parent=1 // loop_header
      %s13 = sphi 0, %s17
      %p14 = scmp.ge.s32.totalorder %s13, 6
      %s20 = sphi 0, %s32
      %s21 = sphi 0, %s28
      %s22 = sphi 0, %s20
      %s23 = sphi 0, %s21
      %s24 = sphi 0, %s22
      %s25 = sphi 0, %s23
      %s37 = sphi 0, %s39
      %s40 = sphi 0, %s37
      %s41 = sphi 0, %s40
      %s57 = sphi 0, %s41
      %s69 = sphi 0, %s71
      %s72 = sphi 0, %s69
      %s73 = sphi 0, %s72
      %s89 = sphi 0, %s73
      %s93 = sphi 0, %s93
      %s95 = sphi 0, %s93
      %s96 = sphi 0, %s95
      %s110 = sphi 0, %s96
      %s114 = sphi 0, %s114
      %s116 = sphi 0, %s114
      %s117 = sphi 0, %s116
      %s131 = sphi 0, %s117
      %s139 = sphi 0, %s141
      %s142 = sphi 0, %s139
      %s143 = sphi 0, %s142
      %s159 = sphi 0, %s143
    $region4: #{tpu_custom_call.1} parent=1 // loop_header_branch
      %16 = sbr.rel (%p14) target = $region8
    $region5: #{tpu_custom_call.1} parent=1 // loop_body
      %s18 = ssub.s32 %s13, 1
      %s19 = ssub.s32 %s13, 2
      %s26 = sadd.s32 1, %s21
      %p27 = scmp.ge.s32.totalorder %s26, 2
      %s28 = scalar_select %p27, 0, %s26
      %s29 = sadd.s32 1, %s20
      %s30 = scalar_select %p27, %s29, %s20
      %p31 = scmp.ge.s32.totalorder %s30, 2
      %s32 = scalar_select %p31, 0, %s30
      %s33 = ssub.s32 %s20, %s32
      %s34 = ssub.s32 %s21, %s28
      %s35 = sor.u32 %s33, %s34
      %p36 = scmp.eq.s32.totalorder %s35, 0
      %s38 = sadd.s32 %s37, 1
      %s39 = scalar_select %p36, %s37, %s38
      %p42 = pneg %p36
      %p43 = scmp.eq.s32.totalorder %s13, 3
      %p44 = por %p42, %p43
      %p45 = scmp.ne.s32.totalorder %s37, %s40
      %p46 = scmp.eq.s32.totalorder %s13, 0
      %p47 = por %p45, %p46
      %p48 = scmp.ne.s32.totalorder %s37, %s40
      %p49 = scmp.eq.s32.totalorder %s18, 3
      %p50 = por %p48, %p49
      %p51 = scmp.ne.s32.totalorder %s40, %s41
      %p52 = scmp.eq.s32.totalorder %s18, 0
      %p53 = por %p51, %p52
      %p54 = scmp.ne.s32.totalorder %s40, %s41
      %p55 = scmp.eq.s32.totalorder %s19, 3
      %p56 = por %p54, %p55
      %p58 = scmp.ne.s32.totalorder %s41, %s57
      %p59 = scmp.eq.s32.totalorder %s19, 0
      %p60 = por %p58, %p59
      %s61 = sadd.s32 %s21, 1
      %s62 = smul.u32 %s61, 4
      %s63 = sadd.s32 %s28, 1
      %s64 = smul.u32 %s63, 4
      %s65 = ssub.s32 %s20, %s32
      %s66 = ssub.s32 %s62, %s64
      %s67 = sor.u32 %s65, %s66
      %p68 = scmp.eq.s32.totalorder %s67, 0
      %s70 = sadd.s32 %s69, 1
      %s71 = scalar_select %p68, %s69, %s70
      %p74 = pneg %p68
      %p75 = scmp.eq.s32.totalorder %s13, 3
      %p76 = por %p74, %p75
      %p77 = scmp.ne.s32.totalorder %s69, %s72
      %p78 = scmp.eq.s32.totalorder %s13, 0
      %p79 = por %p77, %p78
      %p80 = scmp.ne.s32.totalorder %s69, %s72
      %p81 = scmp.eq.s32.totalorder %s18, 3
      %p82 = por %p80, %p81
      %p83 = scmp.ne.s32.totalorder %s72, %s73
      %p84 = scmp.eq.s32.totalorder %s18, 0
      %p85 = por %p83, %p84
      %p86 = scmp.ne.s32.totalorder %s72, %s73
      %p87 = scmp.eq.s32.totalorder %s19, 3
      %p88 = por %p86, %p87
      %p90 = scmp.ne.s32.totalorder %s73, %s89
      %p91 = scmp.eq.s32.totalorder %s19, 0
      %p92 = por %p90, %p91
      %s94 = sadd.s32 %s93, 1
      %p97 = scmp.eq.s32.totalorder %s13, 3
      %p98 = scmp.ne.s32.totalorder %s93, %s95
      %p99 = scmp.eq.s32.totalorder %s13, 0
      %p100 = por %p98, %p99
      %p101 = scmp.ne.s32.totalorder %s93, %s95
      %p102 = scmp.eq.s32.totalorder %s18, 3
      %p103 = por %p101, %p102
      %p104 = scmp.ne.s32.totalorder %s95, %s96
      %p105 = scmp.eq.s32.totalorder %s18, 0
      %p106 = por %p104, %p105
      %p107 = scmp.ne.s32.totalorder %s95, %s96
      %p108 = scmp.eq.s32.totalorder %s19, 3
      %p109 = por %p107, %p108
      %p111 = scmp.ne.s32.totalorder %s96, %s110
      %p112 = scmp.eq.s32.totalorder %s19, 0
      %p113 = por %p111, %p112
      %s115 = sadd.s32 %s114, 1
      %p118 = scmp.eq.s32.totalorder %s13, 3
      %p119 = scmp.ne.s32.totalorder %s114, %s116
      %p120 = scmp.eq.s32.totalorder %s13, 0
      %p121 = por %p119, %p120
      %p122 = scmp.ne.s32.totalorder %s114, %s116
      %p123 = scmp.eq.s32.totalorder %s18, 3
      %p124 = por %p122, %p123
      %p125 = scmp.ne.s32.totalorder %s116, %s117
      %p126 = scmp.eq.s32.totalorder %s18, 0
      %p127 = por %p125, %p126
      %p128 = scmp.ne.s32.totalorder %s116, %s117
      %p129 = scmp.eq.s32.totalorder %s19, 3
      %p130 = por %p128, %p129
      %p132 = scmp.ne.s32.totalorder %s117, %s131
      %p133 = scmp.eq.s32.totalorder %s19, 0
      %p134 = por %p132, %p133
      %s135 = ssub.s32 %s20, %s32
      %s136 = ssub.s32 %s21, %s28
      %s137 = sor.u32 %s135, %s136
      %p138 = scmp.eq.s32.totalorder %s137, 0
      %s140 = sadd.s32 %s139, 1
      %s141 = scalar_select %p138, %s139, %s140
      %p144 = pneg %p138
      %p145 = scmp.eq.s32.totalorder %s13, 3
      %p146 = por %p144, %p145
      %p147 = scmp.ne.s32.totalorder %s139, %s142
      %p148 = scmp.eq.s32.totalorder %s13, 0
      %p149 = por %p147, %p148
      %p150 = scmp.ne.s32.totalorder %s139, %s142
      %p151 = scmp.eq.s32.totalorder %s18, 3
      %p152 = por %p150, %p151
      %p153 = scmp.ne.s32.totalorder %s142, %s143
      %p154 = scmp.eq.s32.totalorder %s18, 0
      %p155 = por %p153, %p154
      %p156 = scmp.ne.s32.totalorder %s142, %s143
      %p157 = scmp.eq.s32.totalorder %s19, 3
      %p158 = por %p156, %p157
      %p160 = scmp.ne.s32.totalorder %s143, %s159
      %p161 = scmp.eq.s32.totalorder %s19, 0
      %p162 = por %p160, %p161
      %p163 = scmp.le.s32.totalorder 1, %s13
      %p164 = scmp.lt.s32.totalorder %s13, 5
      %p165 = pnand %p163, %p164
      %p166 = pneg %p165
      // Predicated region
      $region9: #{tpu_custom_call.1} parent=5 // pred_check
        _
      $region10: #{tpu_custom_call.1} parent=5 // pred_check_branch
        %168 = sbr.rel (%p165) target = $region12
      $region11: #{tpu_custom_call.1} parent=5 // pred_region
        %s169 = ssub.s32 %s13, 1
        // Predicated region
        $region13: #{tpu_custom_call.1} parent=11 // pred_check
          %p170 = pneg %p106
        $region14: #{tpu_custom_call.1} parent=11 // pred_check_branch
          %172 = sbr.rel (%p170) target = $region16
        $region15: #{tpu_custom_call.1} parent=11 // pred_region
          _
        $region16: #{tpu_custom_call.1} parent=11 // pred_fallthru
          _
        // Predicated region
        $region17: #{tpu_custom_call.1} parent=11 // pred_check
          %p173 = pneg %p127
        $region18: #{tpu_custom_call.1} parent=11 // pred_check_branch
          %175 = sbr.rel (%p173) target = $region20
        $region19: #{tpu_custom_call.1} parent=11 // pred_region
          _
        $region20: #{tpu_custom_call.1} parent=11 // pred_fallthru
          _
      $region12: #{tpu_custom_call.1} parent=5 // pred_fallthru
        _
      %p176 = scmp.lt.s32.totalorder %s13, 4
      // Predicated region
      $region21: #{tpu_custom_call.1} parent=5 // pred_check
        %p177 = pneg %p176
      $region22: #{tpu_custom_call.1} parent=5 // pred_check_branch
        %179 = sbr.rel (%p177) target = $region24
      $region23: #{tpu_custom_call.1} parent=5 // pred_region
        // Predicated region
        $region25: #{tpu_custom_call.1} parent=23 // pred_check
          %p180 = pneg %p47
        $region26: #{tpu_custom_call.1} parent=23 // pred_check_branch
          %182 = sbr.rel (%p180) target = $region28
        $region27: #{tpu_custom_call.1} parent=23 // pred_region
          %s183 = smul.u32 8, %s21
          %s184 = ssub.s32 18, %s183
          %p185 = scmp.lt.s32.totalorder %s184, 8
          %s186 = scalar_select %p185, %s184, 8
          %s187 = smul.u32 64, %s186
          %s188 = smul.u32 %s187, 3
          %p189 = scmp.lt.s32.totalorder %s20, 1
          %s190 = scalar_select %p189, %s20, 1
          %p191 = scmp.lt.s32.totalorder %s183, 17
          %s192 = scalar_select %p191, %s183, 17
          %s193 = smul.addr %s192, 3
          %s194 = smul.addr %s190, 54
          %s195 = sadd.s32 %s193, %s194
          %s196 = smul.addr %s195, 4
          %s197 = scalar_lea.vmem %s0, %s196
          %s198 = smul.u32 8, %s21
          %s199 = ssub.s32 18, %s198
          %p200 = scmp.lt.s32.totalorder %s199, 8
          %s201 = scalar_select %p200, %s199, 8
          %s202 = smul.u32 64, %s201
          %s203 = smul.u32 %s202, 3
        $region28: #{tpu_custom_call.1} parent=23 // pred_fallthru
          _
        // Predicated region
        $region29: #{tpu_custom_call.1} parent=23 // pred_check
          %p204 = pneg %p79
        $region30: #{tpu_custom_call.1} parent=23 // pred_check_branch
          %206 = sbr.rel (%p204) target = $region32
        $region31: #{tpu_custom_call.1} parent=23 // pred_region
          %s207 = sadd.s32 %s21, 1
          %s208 = smul.u32 %s207, 4
          %s209 = smul.u32 2, %s208
          %p210 = scmp.lt.s32.totalorder %s20, 1
          %s211 = scalar_select %p210, %s20, 1
          %p212 = scmp.lt.s32.totalorder %s209, 17
          %s213 = scalar_select %p212, %s209, 17
          %s214 = smul.addr %s213, 3
          %s215 = smul.addr %s211, 54
          %s216 = sadd.s32 %s214, %s215
          %s217 = smul.addr %s216, 4
          %s218 = scalar_lea.vmem %s1, %s217
          %s219 = sadd.s32 %s21, 1
          %s220 = smul.u32 %s219, 4
          %s221 = smul.u32 2, %s220
        $region32: #{tpu_custom_call.1} parent=23 // pred_fallthru
          _
      $region24: #{tpu_custom_call.1} parent=5 // pred_fallthru
        _
      %p222 = scmp.le.s32.totalorder 1, %s13
      %p223 = scmp.lt.s32.totalorder %s13, 5
      %p224 = pnand %p222, %p223
      %p225 = pneg %p224
      // Predicated region
      $region33: #{tpu_custom_call.1} parent=5 // pred_check
        _
      $region34: #{tpu_custom_call.1} parent=5 // pred_check_branch
        %227 = sbr.rel (%p224) target = $region36
      $region35: #{tpu_custom_call.1} parent=5 // pred_region
        %s228 = ssub.s32 %s13, 1
        %s229 = smul.u32 8, %s23
        %s230 = ssub.s32 18, %s229
        %p231 = scmp.lt.s32.totalorder %s230, 8
        %s232 = scalar_select %p231, %s230, 8
        %s233 = smul.u32 64, %s232
        %s234 = smul.u32 %s233, 3
        %p235 = scmp.lt.s32.totalorder %s22, 1
        %s236 = scalar_select %p235, %s22, 1
        %p237 = scmp.lt.s32.totalorder %s229, 17
        %s238 = scalar_select %p237, %s229, 17
        %s239 = smul.addr %s238, 3
        %s240 = smul.addr %s236, 54
        %s241 = sadd.s32 %s239, %s240
        %s242 = smul.addr %s241, 4
        %s243 = scalar_lea.vmem %s0, %s242
        %p244 = pneg %p53
        %p245 = pneg %p50
        %s246 = sadd.s32 %s23, 1
        %s247 = smul.u32 %s246, 4
        %s248 = smul.u32 2, %s247
        %p249 = scmp.lt.s32.totalorder %s22, 1
        %s250 = scalar_select %p249, %s22, 1
        %p251 = scmp.lt.s32.totalorder %s248, 17
        %s252 = scalar_select %p251, %s248, 17
        %s253 = smul.addr %s252, 3
        %s254 = smul.addr %s250, 54
        %s255 = sadd.s32 %s253, %s254
        %s256 = smul.addr %s255, 4
        %s257 = scalar_lea.vmem %s1, %s256
        %p258 = pneg %p85
        %p259 = pneg %p82
        %p260 = pneg %p106
        %p261 = pneg %p103
        %p262 = pneg %p127
        %p263 = pneg %p124
        %p264 = pneg %p155
        %p265 = pneg %p152
        %s266 = sand.u32 %s142, 1
        %s267 = scalar_lea.sflag [#allocation3], %s266
        %s268 = sand.u32 %s142, 1
        %s269 = smul.addr %s268, 512
        %s270 = scalar_lea.vmem [#allocation2], %s269
        %s271 = smul.u32 8, %s23
        %s272 = ssub.s32 18, %s271
        %p273 = scmp.lt.s32.totalorder %s272, 8
        %s274 = scalar_select %p273, %s272, 8
        %s275 = smul.u32 64, %s274
        %s276 = smul.u32 %s275, 3
        %p277 = scmp.lt.s32.totalorder %s22, 1
        %s278 = scalar_select %p277, %s22, 1
        %p279 = scmp.lt.s32.totalorder %s271, 17
        %s280 = scalar_select %p279, %s271, 17
        %s281 = smul.addr %s280, 3
        %s282 = smul.addr %s278, 54
        %s283 = sadd.s32 %s281, %s282
        %s284 = smul.addr %s283, 4
        %s285 = scalar_lea.vmem %s0, %s284
        %s286 = smul.u32 8, %s23
        %s287 = ssub.s32 18, %s286
        %p288 = scmp.lt.s32.totalorder %s287, 8
        %s289 = scalar_select %p288, %s287, 8
        %s290 = smul.u32 64, %s289
        %s291 = smul.u32 %s290, 3
        %s292 = sadd.s32 %s23, 1
        %s293 = smul.u32 %s292, 4
        %s294 = smul.u32 2, %s293
        %p295 = scmp.lt.s32.totalorder %s22, 1
        %s296 = scalar_select %p295, %s22, 1
        %p297 = scmp.lt.s32.totalorder %s294, 17
        %s298 = scalar_select %p297, %s294, 17
        %s299 = smul.addr %s298, 3
        %s300 = smul.addr %s296, 54
        %s301 = sadd.s32 %s299, %s300
        %s302 = smul.addr %s301, 4
        %s303 = scalar_lea.vmem %s1, %s302
        %s304 = sadd.s32 %s23, 1
        %s305 = smul.u32 %s304, 4
        %s306 = smul.u32 2, %s305
        %s307 = smul.u32 8, %s23
        %v309 = vld [vmem:[%s285] sm:$0xf]
        %v310 = vld [vmem:[%s285 + $0x4] sm:$0xf]
        %v311 = vld [vmem:[%s285 + $0x8] sm:$0x1]
        %v312 = vld [vmem:[%s285 + $0xc] sm:$0xf]
        %v313 = vld [vmem:[%s285 + $0x10] sm:$0xf]
        %v314 = vld [vmem:[%s285 + $0x14] sm:$0x1]
        %v315 = vld [vmem:[%s285 + $0x18] sm:$0xf]
        %v316 = vld [vmem:[%s285 + $0x1c] sm:$0xf]
        %v317 = vld [vmem:[%s285 + $0x20] sm:$0x1]
        %v318 = vld [vmem:[%s285 + $0x24] sm:$0xf]
        %v319 = vld [vmem:[%s285 + $0x28] sm:$0xf]
        %v320 = vld [vmem:[%s285 + $0x2c] sm:$0x1]
        %v321 = vld [vmem:[%s285 + $0x30] sm:$0xf]
        %v322 = vld [vmem:[%s285 + $0x34] sm:$0xf]
        %v323 = vld [vmem:[%s285 + $0x38] sm:$0x1]
        %v324 = vld [vmem:[%s285 + $0x3c] sm:$0xf]
        %v325 = vld [vmem:[%s285 + $0x40] sm:$0xf]
        %v326 = vld [vmem:[%s285 + $0x44] sm:$0x1]
        %v327 = vld [vmem:[%s285 + $0x48] sm:$0xf]
        %v328 = vld [vmem:[%s285 + $0x4c] sm:$0xf]
        %v329 = vld [vmem:[%s285 + $0x50] sm:$0x1]
        %v330 = vld [vmem:[%s285 + $0x54] sm:$0xf]
        %v331 = vld [vmem:[%s285 + $0x58] sm:$0xf]
        %v332 = vld [vmem:[%s285 + $0x5c] sm:$0x1]
        %v333 = vld [vmem:[%s303] sm:$0xf]
        %v334 = vld [vmem:[%s303 + $0x4] sm:$0xf]
        %v335 = vld [vmem:[%s303 + $0x8] sm:$0x1]
        %v336 = vld [vmem:[%s303 + $0xc] sm:$0xf]
        %v337 = vld [vmem:[%s303 + $0x10] sm:$0xf]
        %v338 = vld [vmem:[%s303 + $0x14] sm:$0x1]
        %vm339 = vsmask.f32 3328
        %vm340 = vsmask.f32 7440
        %vm341 = vmor %vm339, %vm340
        %v343 = vshrl.u32 %v309, 16
        %v345 = vrot.slane %v343, 4
        %v346 = vshll.u32 %v309, 16
        %v348 = vrot.slane %v346, 5
        %v349 = vor.u32 %v345, %v348
        %v350 = vrot.slane %v349, 4
        %v352 = vshll.u32 %v310, 16
        %v354 = vrot.slane %v352, 5
        %v355 = vsel %vm341, %v350, %v354
        %v356 = vshrl.u32 %v310, 16
        %v358 = vrot.slane %v356, 4
        %v359 = vor.u32 %v358, %v354
        %v360 = vrot.slane %v359, 4
        %v362 = vshll.u32 %v311, 16
        %v364 = vrot.slane %v362, 5
        %v365 = vsel %vm341, %v360, %v364
        %v367 = vshrl.u32 %v312, 16
        %v369 = vrot.slane %v367, 4
        %v370 = vshll.u32 %v312, 16
        %v372 = vrot.slane %v370, 5
        %v373 = vor.u32 %v369, %v372
        %v374 = vrot.slane %v373, 4
        %v376 = vshll.u32 %v313, 16
        %v378 = vrot.slane %v376, 5
        %v379 = vsel %vm341, %v374, %v378
        %v380 = vshrl.u32 %v313, 16
        %v382 = vrot.slane %v380, 4
        %v383 = vor.u32 %v382, %v378
        %v384 = vrot.slane %v383, 4
        %v386 = vshll.u32 %v314, 16
        %v388 = vrot.slane %v386, 5
        %v389 = vsel %vm341, %v384, %v388
        %v391 = vshrl.u32 %v315, 16
        %v393 = vrot.slane %v391, 4
        %v394 = vshll.u32 %v315, 16
        %v396 = vrot.slane %v394, 5
        %v397 = vor.u32 %v393, %v396
        %v398 = vrot.slane %v397, 4
        %v400 = vshll.u32 %v316, 16
        %v402 = vrot.slane %v400, 5
        %v403 = vsel %vm341, %v398, %v402
        %v404 = vshrl.u32 %v316, 16
        %v406 = vrot.slane %v404, 4
        %v407 = vor.u32 %v406, %v402
        %v408 = vrot.slane %v407, 4
        %v410 = vshll.u32 %v317, 16
        %v412 = vrot.slane %v410, 5
        %v413 = vsel %vm341, %v408, %v412
        %v415 = vshrl.u32 %v318, 16
        %v417 = vrot.slane %v415, 4
        %v418 = vshll.u32 %v318, 16
        %v420 = vrot.slane %v418, 5
        %v421 = vor.u32 %v417, %v420
        %v422 = vrot.slane %v421, 4
        %v424 = vshll.u32 %v319, 16
        %v426 = vrot.slane %v424, 5
        %v427 = vsel %vm341, %v422, %v426
        %v428 = vshrl.u32 %v319, 16
        %v430 = vrot.slane %v428, 4
        %v431 = vor.u32 %v430, %v426
        %v432 = vrot.slane %v431, 4
        %v434 = vshll.u32 %v320, 16
        %v436 = vrot.slane %v434, 5
        %v437 = vsel %vm341, %v432, %v436
        %v439 = vshrl.u32 %v321, 16
        %v441 = vrot.slane %v439, 4
        %v442 = vshll.u32 %v321, 16
        %v444 = vrot.slane %v442, 5
        %v445 = vor.u32 %v441, %v444
        %v446 = vrot.slane %v445, 4
        %v448 = vshll.u32 %v322, 16
        %v450 = vrot.slane %v448, 5
        %v451 = vsel %vm341, %v446, %v450
        %v452 = vshrl.u32 %v322, 16
        %v454 = vrot.slane %v452, 4
        %v455 = vor.u32 %v454, %v450
        %v456 = vrot.slane %v455, 4
        %v458 = vshll.u32 %v323, 16
        %v460 = vrot.slane %v458, 5
        %v461 = vsel %vm341, %v456, %v460
        %v463 = vshrl.u32 %v324, 16
        %v465 = vrot.slane %v463, 4
        %v466 = vshll.u32 %v324, 16
        %v468 = vrot.slane %v466, 5
        %v469 = vor.u32 %v465, %v468
        %v470 = vrot.slane %v469, 4
        %v472 = vshll.u32 %v325, 16
        %v474 = vrot.slane %v472, 5
        %v475 = vsel %vm341, %v470, %v474
        %v476 = vshrl.u32 %v325, 16
        %v478 = vrot.slane %v476, 4
        %v479 = vor.u32 %v478, %v474
        %v480 = vrot.slane %v479, 4
        %v482 = vshll.u32 %v326, 16
        %v484 = vrot.slane %v482, 5
        %v485 = vsel %vm341, %v480, %v484
        %v487 = vshrl.u32 %v327, 16
        %v489 = vrot.slane %v487, 4
        %v490 = vshll.u32 %v327, 16
        %v492 = vrot.slane %v490, 5
        %v493 = vor.u32 %v489, %v492
        %v494 = vrot.slane %v493, 4
        %v496 = vshll.u32 %v328, 16
        %v498 = vrot.slane %v496, 5
        %v499 = vsel %vm341, %v494, %v498
        %v500 = vshrl.u32 %v328, 16
        %v502 = vrot.slane %v500, 4
        %v503 = vor.u32 %v502, %v498
        %v504 = vrot.slane %v503, 4
        %v506 = vshll.u32 %v329, 16
        %v508 = vrot.slane %v506, 5
        %v509 = vsel %vm341, %v504, %v508
        %v511 = vshrl.u32 %v330, 16
        %v513 = vrot.slane %v511, 4
        %v514 = vshll.u32 %v330, 16
        %v516 = vrot.slane %v514, 5
        %v517 = vor.u32 %v513, %v516
        %v518 = vrot.slane %v517, 4
        %v520 = vshll.u32 %v331, 16
        %v522 = vrot.slane %v520, 5
        %v523 = vsel %vm341, %v518, %v522
        %v524 = vshrl.u32 %v331, 16
        %v526 = vrot.slane %v524, 4
        %v527 = vor.u32 %v526, %v522
        %v528 = vrot.slane %v527, 4
        %v530 = vshll.u32 %v332, 16
        %v532 = vrot.slane %v530, 5
        %v533 = vsel %vm341, %v528, %v532
        %vm558 = vcmask 1042432
        %vm559 = vcmask 1046532
        %vm560 = vmor %vm558, %vm559
        %v561 = vrot.slane %v309, 5
        %v562 = vrot.slane %v561, 4
        %v563 = vrot.slane %v310, 5
        %v564 = vsel %vm560, %v562, %v563
        %v565 = vrot.slane %v563, 4
        %v566 = vrot.slane %v311, 5
        %v567 = vsel %vm560, %v565, %v566
        %v568 = vrot.slane %v312, 5
        %v569 = vrot.slane %v568, 4
        %v570 = vrot.slane %v313, 5
        %v571 = vsel %vm560, %v569, %v570
        %v572 = vrot.slane %v570, 4
        %v573 = vrot.slane %v314, 5
        %v574 = vsel %vm560, %v572, %v573
        %v575 = vrot.slane %v315, 5
        %v576 = vrot.slane %v575, 4
        %v577 = vrot.slane %v316, 5
        %v578 = vsel %vm560, %v576, %v577
        %v579 = vrot.slane %v577, 4
        %v580 = vrot.slane %v317, 5
        %v581 = vsel %vm560, %v579, %v580
        %v582 = vrot.slane %v318, 5
        %v583 = vrot.slane %v582, 4
        %v584 = vrot.slane %v319, 5
        %v585 = vsel %vm560, %v583, %v584
        %v586 = vrot.slane %v584, 4
        %v587 = vrot.slane %v320, 5
        %v588 = vsel %vm560, %v586, %v587
        %v589 = vrot.slane %v321, 5
        %v590 = vrot.slane %v589, 4
        %v591 = vrot.slane %v322, 5
        %v592 = vsel %vm560, %v590, %v591
        %v593 = vrot.slane %v591, 4
        %v594 = vrot.slane %v323, 5
        %v595 = vsel %vm560, %v593, %v594
        %v596 = vrot.slane %v324, 5
        %v597 = vrot.slane %v596, 4
        %v598 = vrot.slane %v325, 5
        %v599 = vsel %vm560, %v597, %v598
        %v600 = vrot.slane %v598, 4
        %v601 = vrot.slane %v326, 5
        %v602 = vsel %vm560, %v600, %v601
        %v603 = vrot.slane %v327, 5
        %v604 = vrot.slane %v603, 4
        %v605 = vrot.slane %v328, 5
        %v606 = vsel %vm560, %v604, %v605
        %v607 = vrot.slane %v605, 4
        %v608 = vrot.slane %v329, 5
        %v609 = vsel %vm560, %v607, %v608
        %v610 = vrot.slane %v330, 5
        %v611 = vrot.slane %v610, 4
        %v612 = vrot.slane %v331, 5
        %v613 = vsel %vm560, %v611, %v612
        %v614 = vrot.slane %v612, 4
        %v615 = vrot.slane %v332, 5
        %v616 = vsel %vm560, %v614, %v615
        %v618 = vshrl.u32 %v333, 16
        %v620 = vrot.slane %v618, 4
        %v621 = vshll.u32 %v333, 16
        %v623 = vrot.slane %v621, 5
        %v624 = vor.u32 %v620, %v623
        %v625 = vrot.slane %v624, 4
        %v627 = vshll.u32 %v334, 16
        %v629 = vrot.slane %v627, 5
        %v630 = vsel %vm341, %v625, %v629
        %v631 = vshrl.u32 %v334, 16
        %v633 = vrot.slane %v631, 4
        %v634 = vor.u32 %v633, %v629
        %v635 = vrot.slane %v634, 4
        %v637 = vshll.u32 %v335, 16
        %v639 = vrot.slane %v637, 5
        %v640 = vsel %vm341, %v635, %v639
        %v644 = vrot.slane %v333, 5
        %v645 = vrot.slane %v644, 4
        %v646 = vrot.slane %v334, 5
        %v647 = vsel %vm560, %v645, %v646
        %v648 = vrot.slane %v646, 4
        %v649 = vrot.slane %v335, 5
        %v650 = vsel %vm560, %v648, %v649
        %v652 = vshrl.u32 %v336, 16
        %v654 = vrot.slane %v652, 4
        %v655 = vshll.u32 %v336, 16
        %v657 = vrot.slane %v655, 5
        %v658 = vor.u32 %v654, %v657
        %v659 = vrot.slane %v658, 4
        %v661 = vshll.u32 %v337, 16
        %v663 = vrot.slane %v661, 5
        %v664 = vsel %vm341, %v659, %v663
        %v665 = vshrl.u32 %v337, 16
        %v667 = vrot.slane %v665, 4
        %v668 = vor.u32 %v667, %v663
        %v669 = vrot.slane %v668, 4
        %v671 = vshll.u32 %v338, 16
        %v673 = vrot.slane %v671, 5
        %v674 = vsel %vm341, %v669, %v673
        %v678 = vrot.slane %v336, 5
        %v679 = vrot.slane %v678, 4
        %v680 = vrot.slane %v337, 5
        %v681 = vsel %vm560, %v679, %v680
        %v682 = vrot.slane %v680, 4
        %v683 = vrot.slane %v338, 5
        %v684 = vsel %vm560, %v682, %v683
        %v685 = vld [vmem:[%s3] sm:$0x1]
        %v686 = vunpack.c.l.b16 %v309
        %v687 = vunpack.c.l.b16 %v310
        %v688 = vunpack.c.l.b16 %v312
        %v689 = vunpack.c.l.b16 %v313
        %v690 = vunpack.c.l.b16 %v315
        %v691 = vunpack.c.l.b16 %v316
        %v692 = vunpack.c.l.b16 %v318
        %v693 = vunpack.c.l.b16 %v319
        %v694 = vunpack.c.l.b16 %v321
        %v695 = vunpack.c.l.b16 %v322
        %v696 = vunpack.c.l.b16 %v324
        %v697 = vunpack.c.l.b16 %v325
        %v698 = vunpack.c.l.b16 %v327
        %v699 = vunpack.c.l.b16 %v328
        %v700 = vunpack.c.l.b16 %v330
        %v701 = vunpack.c.l.b16 %v331
        %v702 = vpack.c.b16 %v687, %v686
        %v703 = vpack.c.b16 %v689, %v688
        %v704 = vpack.c.b16 %v691, %v690
        %v705 = vpack.c.b16 %v693, %v692
        %v706 = vpack.c.b16 %v695, %v694
        %v707 = vpack.c.b16 %v697, %v696
        %v708 = vpack.c.b16 %v699, %v698
        %v709 = vpack.c.b16 %v701, %v700
        %v718 = vunpack.c.l.b16 %v355
        %v719 = vunpack.c.l.b16 %v365
        %v720 = vunpack.c.l.b16 %v379
        %v721 = vunpack.c.l.b16 %v389
        %v722 = vunpack.c.l.b16 %v403
        %v723 = vunpack.c.l.b16 %v413
        %v724 = vunpack.c.l.b16 %v427
        %v725 = vunpack.c.l.b16 %v437
        %v726 = vunpack.c.l.b16 %v451
        %v727 = vunpack.c.l.b16 %v461
        %v728 = vunpack.c.l.b16 %v475
        %v729 = vunpack.c.l.b16 %v485
        %v730 = vunpack.c.l.b16 %v499
        %v731 = vunpack.c.l.b16 %v509
        %v732 = vunpack.c.l.b16 %v523
        %v733 = vunpack.c.l.b16 %v533
        %v734 = vpack.c.b16 %v719, %v718
        %v735 = vpack.c.b16 %v721, %v720
        %v736 = vpack.c.b16 %v723, %v722
        %v737 = vpack.c.b16 %v725, %v724
        %v738 = vpack.c.b16 %v727, %v726
        %v739 = vpack.c.b16 %v729, %v728
        %v740 = vpack.c.b16 %v731, %v730
        %v741 = vpack.c.b16 %v733, %v732
        %v750 = vunpack.c.l.b16 %v333
        %v751 = vunpack.c.l.b16 %v334
        %v752 = vpack.c.b16 %v751, %v750
        %v754 = vunpack.c.l.b16 %v630
        %v755 = vunpack.c.l.b16 %v640
        %v756 = vpack.c.b16 %v755, %v754
        %v758 = vld [vmem:[%s2] sm:$0xf]
        %v759 = vld [vmem:[%s2 + $0x4] sm:$0xf]
        %v760 = vld [vmem:[%s2 + $0x8] sm:$0xf]
        %v761 = vld [vmem:[%s2 + $0xc] sm:$0xf]
        %v762 = vld [vmem:[%s2 + $0x10] sm:$0xf]
        %v763 = vld [vmem:[%s2 + $0x14] sm:$0xf]
        %v764 = vld [vmem:[%s2 + $0x18] sm:$0xf]
        %v765 = vld [vmem:[%s2 + $0x1c] sm:$0xf]
        %v766 = vld [vmem:[%s2 + $0x20] sm:$0xf]
        %v767 = vld [vmem:[%s2 + $0x24] sm:$0xf]
        %v768 = vld [vmem:[%s2 + $0x28] sm:$0xf]
        %v769 = vld [vmem:[%s2 + $0x2c] sm:$0xf]
        %v770 = vld [vmem:[%s2 + $0x30] sm:$0xf]
        %v771 = vld [vmem:[%s2 + $0x34] sm:$0xf]
        %v772 = vld [vmem:[%s2 + $0x38] sm:$0xf]
        %v773 = vld [vmem:[%s2 + $0x3c] sm:$0xf]
        %v774 = vld [vmem:[%s2 + $0x40] sm:$0xf]
        %v775 = vld [vmem:[%s2 + $0x44] sm:$0xf]
        %v776 = vld [vmem:[%s2 + $0x48] sm:$0xf]
        %v777 = vld [vmem:[%s2 + $0x4c] sm:$0xf]
        %v778 = vld [vmem:[%s2 + $0x50] sm:$0xf]
        %v779 = vld [vmem:[%s2 + $0x54] sm:$0xf]
        %v780 = vld [vmem:[%s2 + $0x58] sm:$0xf]
        %v781 = vld [vmem:[%s2 + $0x5c] sm:$0xf]
        %v782 = vld [vmem:[%s2 + $0x60] sm:$0xf]
        %v783 = vld [vmem:[%s2 + $0x64] sm:$0xf]
        %v784 = vld [vmem:[%s2 + $0x68] sm:$0xf]
        %v785 = vld [vmem:[%s2 + $0x6c] sm:$0xf]
        %v786 = vld [vmem:[%s2 + $0x70] sm:$0xf]
        %v787 = vld [vmem:[%s2 + $0x74] sm:$0xf]
        %v788 = vld [vmem:[%s2 + $0x78] sm:$0xf]
        %v789 = vld [vmem:[%s2 + $0x7c] sm:$0xf]
        %v790 = vld [vmem:[%s2 + $0x80] sm:$0xf]
        %v791 = vld [vmem:[%s2 + $0x84] sm:$0xf]
        %v792 = vld [vmem:[%s2 + $0x88] sm:$0xf]
        %v793 = vld [vmem:[%s2 + $0x8c] sm:$0xf]
        %v794 = vld [vmem:[%s2 + $0x90] sm:$0xf]
        %v795 = vld [vmem:[%s2 + $0x94] sm:$0xf]
        %v796 = vld [vmem:[%s2 + $0x98] sm:$0xf]
        %v797 = vld [vmem:[%s2 + $0x9c] sm:$0xf]
        %v798 = vld [vmem:[%s2 + $0xa0] sm:$0xf]
        %v799 = vld [vmem:[%s2 + $0xa4] sm:$0xf]
        %v800 = vld [vmem:[%s2 + $0xa8] sm:$0xf]
        %v801 = vld [vmem:[%s2 + $0xac] sm:$0xf]
        %v802 = vld [vmem:[%s2 + $0xb0] sm:$0xf]
        %v803 = vld [vmem:[%s2 + $0xb4] sm:$0xf]
        %v804 = vld [vmem:[%s2 + $0xb8] sm:$0xf]
        %v805 = vld [vmem:[%s2 + $0xbc] sm:$0xf]
        %v806 = vld [vmem:[%s2 + $0xc0] sm:$0xf]
        %v807 = vld [vmem:[%s2 + $0xc4] sm:$0xf]
        %v808 = vld [vmem:[%s2 + $0xc8] sm:$0xf]
        %v809 = vld [vmem:[%s2 + $0xcc] sm:$0xf]
        %v810 = vld [vmem:[%s2 + $0xd0] sm:$0xf]
        %v811 = vld [vmem:[%s2 + $0xd4] sm:$0xf]
        %v812 = vld [vmem:[%s2 + $0xd8] sm:$0xf]
        %v813 = vld [vmem:[%s2 + $0xdc] sm:$0xf]
        %v814 = vld [vmem:[%s2 + $0xe0] sm:$0xf]
        %v815 = vld [vmem:[%s2 + $0xe4] sm:$0xf]
        %v816 = vld [vmem:[%s2 + $0xe8] sm:$0xf]
        %v817 = vld [vmem:[%s2 + $0xec] sm:$0xf]
        %v818 = vld [vmem:[%s2 + $0xf0] sm:$0xf]
        %v819 = vld [vmem:[%s2 + $0xf4] sm:$0xf]
        %v820 = vld [vmem:[%s2 + $0xf8] sm:$0xf]
        %v821 = vld [vmem:[%s2 + $0xfc] sm:$0xf]
        %v823 = vlaneseq
        %v824 = vshrl.u32 %v823, 7
        %v825 = vsub.s32 0, %v824
        %v826 = vrot.slane %v685, %v825
        %v892 = vunpack.c.l.b16 %v758
        %v893 = vunpack.c.l.b16 %v759
        %v894 = vunpack.c.l.b16 %v760
        %v895 = vunpack.c.l.b16 %v761
        %v896 = vunpack.c.l.b16 %v762
        %v897 = vunpack.c.l.b16 %v763
        %v898 = vunpack.c.l.b16 %v764
        %v899 = vunpack.c.l.b16 %v765
        %v900 = vunpack.c.l.b16 %v766
        %v901 = vunpack.c.l.b16 %v767
        %v902 = vunpack.c.l.b16 %v768
        %v903 = vunpack.c.l.b16 %v769
        %v904 = vunpack.c.l.b16 %v770
        %v905 = vunpack.c.l.b16 %v771
        %v906 = vunpack.c.l.b16 %v772
        %v907 = vunpack.c.l.b16 %v773
        %v908 = vunpack.c.l.b16 %v774
        %v909 = vunpack.c.l.b16 %v775
        %v910 = vunpack.c.l.b16 %v776
        %v911 = vunpack.c.l.b16 %v777
        %v912 = vunpack.c.l.b16 %v778
        %v913 = vunpack.c.l.b16 %v779
        %v914 = vunpack.c.l.b16 %v780
        %v915 = vunpack.c.l.b16 %v781
        %v916 = vunpack.c.l.b16 %v782
        %v917 = vunpack.c.l.b16 %v783
        %v918 = vunpack.c.l.b16 %v784
        %v919 = vunpack.c.l.b16 %v785
        %v920 = vunpack.c.l.b16 %v786
        %v921 = vunpack.c.l.b16 %v787
        %v922 = vunpack.c.l.b16 %v788
        %v923 = vunpack.c.l.b16 %v789
        %v924 = vunpack.c.l.b16 %v790
        %v925 = vunpack.c.l.b16 %v791
        %v926 = vunpack.c.l.b16 %v792
        %v927 = vunpack.c.l.b16 %v793
        %v928 = vunpack.c.l.b16 %v794
        %v929 = vunpack.c.l.b16 %v795
        %v930 = vunpack.c.l.b16 %v796
        %v931 = vunpack.c.l.b16 %v797
        %v932 = vunpack.c.l.b16 %v798
        %v933 = vunpack.c.l.b16 %v799
        %v934 = vunpack.c.l.b16 %v800
        %v935 = vunpack.c.l.b16 %v801
        %v936 = vunpack.c.l.b16 %v802
        %v937 = vunpack.c.l.b16 %v803
        %v938 = vunpack.c.l.b16 %v804
        %v939 = vunpack.c.l.b16 %v805
        %v940 = vunpack.c.l.b16 %v806
        %v941 = vunpack.c.l.b16 %v807
        %v942 = vunpack.c.l.b16 %v808
        %v943 = vunpack.c.l.b16 %v809
        %v944 = vunpack.c.l.b16 %v810
        %v945 = vunpack.c.l.b16 %v811
        %v946 = vunpack.c.l.b16 %v812
        %v947 = vunpack.c.l.b16 %v813
        %v948 = vunpack.c.l.b16 %v814
        %v949 = vunpack.c.l.b16 %v815
        %v950 = vunpack.c.l.b16 %v816
        %v951 = vunpack.c.l.b16 %v817
        %v952 = vunpack.c.l.b16 %v818
        %v953 = vunpack.c.l.b16 %v819
        %v954 = vunpack.c.l.b16 %v820
        %v955 = vunpack.c.l.b16 %v821
        %v956 = vpack.c.b16 %v893, %v892
        %v957 = vpack.c.b16 %v895, %v894
        %v958 = vpack.c.b16 %v897, %v896
        %v959 = vpack.c.b16 %v899, %v898
        %v960 = vpack.c.b16 %v901, %v900
        %v961 = vpack.c.b16 %v903, %v902
        %v962 = vpack.c.b16 %v905, %v904
        %v963 = vpack.c.b16 %v907, %v906
        %v964 = vpack.c.b16 %v909, %v908
        %v965 = vpack.c.b16 %v911, %v910
        %v966 = vpack.c.b16 %v913, %v912
        %v967 = vpack.c.b16 %v915, %v914
        %v968 = vpack.c.b16 %v917, %v916
        %v969 = vpack.c.b16 %v919, %v918
        %v970 = vpack.c.b16 %v921, %v920
        %v971 = vpack.c.b16 %v923, %v922
        %v972 = vpack.c.b16 %v925, %v924
        %v973 = vpack.c.b16 %v927, %v926
        %v974 = vpack.c.b16 %v929, %v928
        %v975 = vpack.c.b16 %v931, %v930
        %v976 = vpack.c.b16 %v933, %v932
        %v977 = vpack.c.b16 %v935, %v934
        %v978 = vpack.c.b16 %v937, %v936
        %v979 = vpack.c.b16 %v939, %v938
        %v980 = vpack.c.b16 %v941, %v940
        %v981 = vpack.c.b16 %v943, %v942
        %v982 = vpack.c.b16 %v945, %v944
        %v983 = vpack.c.b16 %v947, %v946
        %v984 = vpack.c.b16 %v949, %v948
        %v985 = vpack.c.b16 %v951, %v950
        %v986 = vpack.c.b16 %v953, %v952
        %v987 = vpack.c.b16 %v955, %v954
        %1020 = vmatprep.subr.bf16.mxu0 0
        %1021 = vmatpush1.bf16.msra.mxu0 %v956
        %1022 = vmatprep.subr.bf16.mxu0 0
        %1023 = vmatpush1.bf16.msra.mxu0 %v957
        %1024 = vmatprep.subr.bf16.mxu0 0
        %1025 = vmatpush1.bf16.msra.mxu0 %v958
        %1026 = vmatprep.subr.bf16.mxu0 0
        %1027 = vmatpush1.bf16.msra.mxu0 %v959
        %1028 = vmatprep.subr.bf16.mxu0 0
        %1029 = vmatpush1.bf16.msra.mxu0 %v960
        %1030 = vmatprep.subr.bf16.mxu0 0
        %1031 = vmatpush1.bf16.msra.mxu0 %v961
        %1032 = vmatprep.subr.bf16.mxu0 0
        %1033 = vmatpush1.bf16.msra.mxu0 %v962
        %1034 = vmatprep.subr.bf16.mxu0 0
        %1035 = vmatpush1.bf16.msra.mxu0 %v963
        %1036 = vmatprep.subr.bf16.mxu0 0
        %1037 = vmatpush1.bf16.msra.mxu0 %v964
        %1038 = vmatprep.subr.bf16.mxu0 0
        %1039 = vmatpush1.bf16.msra.mxu0 %v965
        %1040 = vmatprep.subr.bf16.mxu0 0
        %1041 = vmatpush1.bf16.msra.mxu0 %v966
        %1042 = vmatprep.subr.bf16.mxu0 0
        %1043 = vmatpush1.bf16.msra.mxu0 %v967
        %1044 = vmatprep.subr.bf16.mxu0 0
        %1045 = vmatpush1.bf16.msra.mxu0 %v968
        %1046 = vmatprep.subr.bf16.mxu0 0
        %1047 = vmatpush1.bf16.msra.mxu0 %v969
        %1048 = vmatprep.subr.bf16.mxu0 0
        %1049 = vmatpush1.bf16.msra.mxu0 %v970
        %1050 = vmatprep.subr.bf16.mxu0 0
        %1051 = vmatpush1.bf16.msra.mxu0 %v971
        %1052 = vmatprep.mubr.bf16.mxu0 %v734
        %1053 = vmatmul.mubr.bf16.gmra.mrb[0].mxu0 %v702
        %v1054 = vpop.f32.mrb[0].mxu0
        %v1055 = vadd.f32 %v826, %v1054
        %v1056 = vpop.f32.mrb[0].mxu0
        %v1057 = vpop.f32.mrb[0].mxu0
        %v1058 = vadd.f32 %v826, %v1057
        %v1059 = vpop.f32.mrb[0].mxu0
        %1060 = vmatprep.mubr.bf16.mxu0 %v735
        %1061 = vmatmul.mubr.bf16.gmra.mrb[0].mxu0 %v703
        %v1062 = vpop.f32.mrb[0].mxu0
        %v1063 = vadd.f32 %v826, %v1062
        %v1064 = vpop.f32.mrb[0].mxu0
        %v1065 = vpop.f32.mrb[0].mxu0
        %v1066 = vadd.f32 %v826, %v1065
        %v1067 = vpop.f32.mrb[0].mxu0
        %1068 = vmatprep.mubr.bf16.mxu0 %v736
        %1069 = vmatmul.mubr.bf16.gmra.mrb[0].mxu0 %v704
        %v1070 = vpop.f32.mrb[0].mxu0
        %v1071 = vadd.f32 %v826, %v1070
        %v1072 = vpop.f32.mrb[0].mxu0
        %v1073 = vpop.f32.mrb[0].mxu0
        %v1074 = vadd.f32 %v826, %v1073
        %v1075 = vpop.f32.mrb[0].mxu0
        %1076 = vmatprep.mubr.bf16.mxu0 %v737
        %1077 = vmatmul.mubr.bf16.gmra.mrb[0].mxu0 %v705
        %v1078 = vpop.f32.mrb[0].mxu0
        %v1079 = vadd.f32 %v826, %v1078
        %v1080 = vpop.f32.mrb[0].mxu0
        %v1081 = vpop.f32.mrb[0].mxu0
        %v1082 = vadd.f32 %v826, %v1081
        %v1083 = vpop.f32.mrb[0].mxu0
        %1084 = vmatprep.mubr.bf16.mxu0 %v738
        %1085 = vmatmul.mubr.bf16.gmra.mrb[0].mxu0 %v706
        %v1086 = vpop.f32.mrb[0].mxu0
        %v1087 = vadd.f32 %v826, %v1086
        %v1088 = vpop.f32.mrb[0].mxu0
        %v1089 = vpop.f32.mrb[0].mxu0
        %v1090 = vadd.f32 %v826, %v1089
        %v1091 = vpop.f32.mrb[0].mxu0
        %1092 = vmatprep.mubr.bf16.mxu0 %v739
        %1093 = vmatmul.mubr.bf16.gmra.mrb[0].mxu0 %v707
        %v1094 = vpop.f32.mrb[0].mxu0
        %v1095 = vadd.f32 %v826, %v1094
        %v1096 = vpop.f32.mrb[0].mxu0
        %v1097 = vpop.f32.mrb[0].mxu0
        %v1098 = vadd.f32 %v826, %v1097
        %v1099 = vpop.f32.mrb[0].mxu0
        %1100 = vmatprep.mubr.bf16.mxu0 %v740
        %1101 = vmatmul.mubr.bf16.gmra.mrb[0].mxu0 %v708
        %v1102 = vpop.f32.mrb[0].mxu0
        %v1103 = vadd.f32 %v826, %v1102
        %v1104 = vpop.f32.mrb[0].mxu0
        %v1105 = vpop.f32.mrb[0].mxu0
        %v1106 = vadd.f32 %v826, %v1105
        %v1107 = vpop.f32.mrb[0].mxu0
        %1108 = vmatprep.mubr.bf16.mxu0 %v741
        %1109 = vmatmul.mubr.bf16.gmra.mrb[0].mxu0 %v709
        %v1110 = vpop.f32.mrb[0].mxu0
        %v1111 = vadd.f32 %v826, %v1110
        %v1112 = vpop.f32.mrb[0].mxu0
        %v1113 = vpop.f32.mrb[0].mxu0
        %v1114 = vadd.f32 %v826, %v1113
        %v1115 = vpop.f32.mrb[0].mxu0
        %1116 = vdwg.mxu0
        %1117 = vmatprep.subr.bf16.mxu0 0
        %1118 = vmatpush1.bf16.msra.mxu0 %v972
        %1119 = vmatprep.subr.bf16.mxu0 0
        %1120 = vmatpush1.bf16.msra.mxu0 %v973
        %1121 = vmatprep.subr.bf16.mxu0 0
        %1122 = vmatpush1.bf16.msra.mxu0 %v974
        %1123 = vmatprep.subr.bf16.mxu0 0
        %1124 = vmatpush1.bf16.msra.mxu0 %v975
        %1125 = vmatprep.subr.bf16.mxu0 0
        %1126 = vmatpush1.bf16.msra.mxu0 %v976
        %1127 = vmatprep.subr.bf16.mxu0 0
        %1128 = vmatpush1.bf16.msra.mxu0 %v977
        %1129 = vmatprep.subr.bf16.mxu0 0
        %1130 = vmatpush1.bf16.msra.mxu0 %v978
        %1131 = vmatprep.subr.bf16.mxu0 0
        %1132 = vmatpush1.bf16.msra.mxu0 %v979
        %1133 = vmatprep.subr.bf16.mxu0 0
        %1134 = vmatpush1.bf16.msra.mxu0 %v980
        %1135 = vmatprep.subr.bf16.mxu0 0
        %1136 = vmatpush1.bf16.msra.mxu0 %v981
        %1137 = vmatprep.subr.bf16.mxu0 0
        %1138 = vmatpush1.bf16.msra.mxu0 %v982
        %1139 = vmatprep.subr.bf16.mxu0 0
        %1140 = vmatpush1.bf16.msra.mxu0 %v983
        %1141 = vmatprep.subr.bf16.mxu0 0
        %1142 = vmatpush1.bf16.msra.mxu0 %v984
        %1143 = vmatprep.subr.bf16.mxu0 0
        %1144 = vmatpush1.bf16.msra.mxu0 %v985
        %1145 = vmatprep.subr.bf16.mxu0 0
        %1146 = vmatpush1.bf16.msra.mxu0 %v986
        %1147 = vmatprep.subr.bf16.mxu0 0
        %1148 = vmatpush1.bf16.msra.mxu0 %v987
        %1149 = vmatprep.mubr.bf16.mxu0 %v735
        %1150 = vmatmul.mubr.bf16.gmra.mrb[0].mxu0 %v703
        %v1151 = vpop.f32.mrb[0].mxu0
        %v1152 = vadd.f32 %v1055, %v1151
        %v1153 = vpop.f32.mrb[0].mxu0
        %v1154 = vpop.f32.mrb[0].mxu0
        %v1155 = vadd.f32 %v1058, %v1154
        %v1156 = vpop.f32.mrb[0].mxu0
        %1157 = vmatprep.mubr.bf16.mxu0 %v736
        %1158 = vmatmul.mubr.bf16.gmra.mrb[0].mxu0 %v704
        %v1159 = vpop.f32.mrb[0].mxu0
        %v1160 = vadd.f32 %v1063, %v1159
        %v1161 = vpop.f32.mrb[0].mxu0
        %v1162 = vpop.f32.mrb[0].mxu0
        %v1163 = vadd.f32 %v1066, %v1162
        %v1164 = vpop.f32.mrb[0].mxu0
        %1165 = vmatprep.mubr.bf16.mxu0 %v737
        %1166 = vmatmul.mubr.bf16.gmra.mrb[0].mxu0 %v705
        %v1167 = vpop.f32.mrb[0].mxu0
        %v1168 = vadd.f32 %v1071, %v1167
        %v1169 = vpop.f32.mrb[0].mxu0
        %v1170 = vpop.f32.mrb[0].mxu0
        %v1171 = vadd.f32 %v1074, %v1170
        %v1172 = vpop.f32.mrb[0].mxu0
        %1173 = vmatprep.mubr.bf16.mxu0 %v738
        %1174 = vmatmul.mubr.bf16.gmra.mrb[0].mxu0 %v706
        %v1175 = vpop.f32.mrb[0].mxu0
        %v1176 = vadd.f32 %v1079, %v1175
        %v1177 = vpop.f32.mrb[0].mxu0
        %v1178 = vpop.f32.mrb[0].mxu0
        %v1179 = vadd.f32 %v1082, %v1178
        %v1180 = vpop.f32.mrb[0].mxu0
        %1181 = vmatprep.mubr.bf16.mxu0 %v739
        %1182 = vmatmul.mubr.bf16.gmra.mrb[0].mxu0 %v707
        %v1183 = vpop.f32.mrb[0].mxu0
        %v1184 = vadd.f32 %v1087, %v1183
        %v1185 = vpop.f32.mrb[0].mxu0
        %v1186 = vpop.f32.mrb[0].mxu0
        %v1187 = vadd.f32 %v1090, %v1186
        %v1188 = vpop.f32.mrb[0].mxu0
        %1189 = vmatprep.mubr.bf16.mxu0 %v740
        %1190 = vmatmul.mubr.bf16.gmra.mrb[0].mxu0 %v708
        %v1191 = vpop.f32.mrb[0].mxu0
        %v1192 = vadd.f32 %v1095, %v1191
        %v1193 = vpop.f32.mrb[0].mxu0
        %v1194 = vpop.f32.mrb[0].mxu0
        %v1195 = vadd.f32 %v1098, %v1194
        %v1196 = vpop.f32.mrb[0].mxu0
        %1197 = vmatprep.mubr.bf16.mxu0 %v741
        %1198 = vmatmul.mubr.bf16.gmra.mrb[0].mxu0 %v709
        %v1199 = vpop.f32.mrb[0].mxu0
        %v1200 = vadd.f32 %v1103, %v1199
        %v1201 = vpop.f32.mrb[0].mxu0
        %v1202 = vpop.f32.mrb[0].mxu0
        %v1203 = vadd.f32 %v1106, %v1202
        %v1204 = vpop.f32.mrb[0].mxu0
        %1205 = vmatprep.mubr.bf16.mxu0 %v756
        %1206 = vmatmul.mubr.bf16.gmra.mrb[0].mxu0 %v752
        %v1207 = vpop.f32.mrb[0].mxu0
        %v1208 = vadd.f32 %v1111, %v1207
        %v1209 = vpop.f32.mrb[0].mxu0
        %v1210 = vpop.f32.mrb[0].mxu0
        %v1211 = vadd.f32 %v1114, %v1210
        %v1212 = vpop.f32.mrb[0].mxu0
        %1213 = vdwg.mxu0
        %1214 = vst [vmem:[%s270] sm:$0xff] %v1152
        %1215 = vst [vmem:[%s270 + $0x8] sm:$0xff] %v1155
        %1216 = vst [vmem:[%s270 + $0x10] sm:$0xff] %v1160
        %1217 = vst [vmem:[%s270 + $0x18] sm:$0xff] %v1163
        %1218 = vst [vmem:[%s270 + $0x20] sm:$0xff] %v1168
        %1219 = vst [vmem:[%s270 + $0x28] sm:$0xff] %v1171
        %1220 = vst [vmem:[%s270 + $0x30] sm:$0xff] %v1176
        %1221 = vst [vmem:[%s270 + $0x38] sm:$0xff] %v1179
        %1222 = vst [vmem:[%s270 + $0x40] sm:$0xff] %v1184
        %1223 = vst [vmem:[%s270 + $0x48] sm:$0xff] %v1187
        %1224 = vst [vmem:[%s270 + $0x50] sm:$0xff] %v1192
        %1225 = vst [vmem:[%s270 + $0x58] sm:$0xff] %v1195
        %1226 = vst [vmem:[%s270 + $0x60] sm:$0xff] %v1200
        %1227 = vst [vmem:[%s270 + $0x68] sm:$0xff] %v1203
        %1228 = vst [vmem:[%s270 + $0x70] sm:$0xff] %v1208
        %1229 = vst [vmem:[%s270 + $0x78] sm:$0xff] %v1211
        %v1230 = vunpack.c.l.b16 %v564
        %v1231 = vunpack.c.l.b16 %v567
        %v1232 = vunpack.c.l.b16 %v571
        %v1233 = vunpack.c.l.b16 %v574
        %v1234 = vunpack.c.l.b16 %v578
        %v1235 = vunpack.c.l.b16 %v581
        %v1236 = vunpack.c.l.b16 %v585
        %v1237 = vunpack.c.l.b16 %v588
        %v1238 = vunpack.c.l.b16 %v592
        %v1239 = vunpack.c.l.b16 %v595
        %v1240 = vunpack.c.l.b16 %v599
        %v1241 = vunpack.c.l.b16 %v602
        %v1242 = vunpack.c.l.b16 %v606
        %v1243 = vunpack.c.l.b16 %v609
        %v1244 = vunpack.c.l.b16 %v613
        %v1245 = vunpack.c.l.b16 %v616
        %v1246 = vpack.c.b16 %v1231, %v1230
        %v1247 = vpack.c.b16 %v1233, %v1232
        %v1248 = vpack.c.b16 %v1235, %v1234
        %v1249 = vpack.c.b16 %v1237, %v1236
        %v1250 = vpack.c.b16 %v1239, %v1238
        %v1251 = vpack.c.b16 %v1241, %v1240
        %v1252 = vpack.c.b16 %v1243, %v1242
        %v1253 = vpack.c.b16 %v1245, %v1244
        %v1262 = vunpack.c.l.b16 %v647
        %v1263 = vunpack.c.l.b16 %v650
        %v1264 = vpack.c.b16 %v1263, %v1262
        %s1266 = scalar_lea.vmem %s2, 256
        %v1267 = vld [vmem:[%s1266] sm:$0xf]
        %v1268 = vld [vmem:[%s1266 + $0x4] sm:$0xf]
        %v1269 = vld [vmem:[%s1266 + $0x8] sm:$0xf]
        %v1270 = vld [vmem:[%s1266 + $0xc] sm:$0xf]
        %v1271 = vld [vmem:[%s1266 + $0x10] sm:$0xf]
        %v1272 = vld [vmem:[%s1266 + $0x14] sm:$0xf]
        %v1273 = vld [vmem:[%s1266 + $0x18] sm:$0xf]
        %v1274 = vld [vmem:[%s1266 + $0x1c] sm:$0xf]
        %v1275 = vld [vmem:[%s1266 + $0x20] sm:$0xf]
        %v1276 = vld [vmem:[%s1266 + $0x24] sm:$0xf]
        %v1277 = vld [vmem:[%s1266 + $0x28] sm:$0xf]
        %v1278 = vld [vmem:[%s1266 + $0x2c] sm:$0xf]
        %v1279 = vld [vmem:[%s1266 + $0x30] sm:$0xf]
        %v1280 = vld [vmem:[%s1266 + $0x34] sm:$0xf]
        %v1281 = vld [vmem:[%s1266 + $0x38] sm:$0xf]
        %v1282 = vld [vmem:[%s1266 + $0x3c] sm:$0xf]
        %v1283 = vld [vmem:[%s1266 + $0x40] sm:$0xf]
        %v1284 = vld [vmem:[%s1266 + $0x44] sm:$0xf]
        %v1285 = vld [vmem:[%s1266 + $0x48] sm:$0xf]
        %v1286 = vld [vmem:[%s1266 + $0x4c] sm:$0xf]
        %v1287 = vld [vmem:[%s1266 + $0x50] sm:$0xf]
        %v1288 = vld [vmem:[%s1266 + $0x54] sm:$0xf]
        %v1289 = vld [vmem:[%s1266 + $0x58] sm:$0xf]
        %v1290 = vld [vmem:[%s1266 + $0x5c] sm:$0xf]
        %v1291 = vld [vmem:[%s1266 + $0x60] sm:$0xf]
        %v1292 = vld [vmem:[%s1266 + $0x64] sm:$0xf]
        %v1293 = vld [vmem:[%s1266 + $0x68] sm:$0xf]
        %v1294 = vld [vmem:[%s1266 + $0x6c] sm:$0xf]
        %v1295 = vld [vmem:[%s1266 + $0x70] sm:$0xf]
        %v1296 = vld [vmem:[%s1266 + $0x74] sm:$0xf]
        %v1297 = vld [vmem:[%s1266 + $0x78] sm:$0xf]
        %v1298 = vld [vmem:[%s1266 + $0x7c] sm:$0xf]
        %v1299 = vld [vmem:[%s1266 + $0x80] sm:$0xf]
        %v1300 = vld [vmem:[%s1266 + $0x84] sm:$0xf]
        %v1301 = vld [vmem:[%s1266 + $0x88] sm:$0xf]
        %v1302 = vld [vmem:[%s1266 + $0x8c] sm:$0xf]
        %v1303 = vld [vmem:[%s1266 + $0x90] sm:$0xf]
        %v1304 = vld [vmem:[%s1266 + $0x94] sm:$0xf]
        %v1305 = vld [vmem:[%s1266 + $0x98] sm:$0xf]
        %v1306 = vld [vmem:[%s1266 + $0x9c] sm:$0xf]
        %v1307 = vld [vmem:[%s1266 + $0xa0] sm:$0xf]
        %v1308 = vld [vmem:[%s1266 + $0xa4] sm:$0xf]
        %v1309 = vld [vmem:[%s1266 + $0xa8] sm:$0xf]
        %v1310 = vld [vmem:[%s1266 + $0xac] sm:$0xf]
        %v1311 = vld [vmem:[%s1266 + $0xb0] sm:$0xf]
        %v1312 = vld [vmem:[%s1266 + $0xb4] sm:$0xf]
        %v1313 = vld [vmem:[%s1266 + $0xb8] sm:$0xf]
        %v1314 = vld [vmem:[%s1266 + $0xbc] sm:$0xf]
        %v1315 = vld [vmem:[%s1266 + $0xc0] sm:$0xf]
        %v1316 = vld [vmem:[%s1266 + $0xc4] sm:$0xf]
        %v1317 = vld [vmem:[%s1266 + $0xc8] sm:$0xf]
        %v1318 = vld [vmem:[%s1266 + $0xcc] sm:$0xf]
        %v1319 = vld [vmem:[%s1266 + $0xd0] sm:$0xf]
        %v1320 = vld [vmem:[%s1266 + $0xd4] sm:$0xf]
        %v1321 = vld [vmem:[%s1266 + $0xd8] sm:$0xf]
        %v1322 = vld [vmem:[%s1266 + $0xdc] sm:$0xf]
        %v1323 = vld [vmem:[%s1266 + $0xe0] sm:$0xf]
        %v1324 = vld [vmem:[%s1266 + $0xe4] sm:$0xf]
        %v1325 = vld [vmem:[%s1266 + $0xe8] sm:$0xf]
        %v1326 = vld [vmem:[%s1266 + $0xec] sm:$0xf]
        %v1327 = vld [vmem:[%s1266 + $0xf0] sm:$0xf]
        %v1328 = vld [vmem:[%s1266 + $0xf4] sm:$0xf]
        %v1329 = vld [vmem:[%s1266 + $0xf8] sm:$0xf]
        %v1330 = vld [vmem:[%s1266 + $0xfc] sm:$0xf]
        %v1395 = vunpack.c.l.b16 %v1267
        %v1396 = vunpack.c.l.b16 %v1268
        %v1397 = vunpack.c.l.b16 %v1269
        %v1398 = vunpack.c.l.b16 %v1270
        %v1399 = vunpack.c.l.b16 %v1271
        %v1400 = vunpack.c.l.b16 %v1272
        %v1401 = vunpack.c.l.b16 %v1273
        %v1402 = vunpack.c.l.b16 %v1274
        %v1403 = vunpack.c.l.b16 %v1275
        %v1404 = vunpack.c.l.b16 %v1276
        %v1405 = vunpack.c.l.b16 %v1277
        %v1406 = vunpack.c.l.b16 %v1278
        %v1407 = vunpack.c.l.b16 %v1279
        %v1408 = vunpack.c.l.b16 %v1280
        %v1409 = vunpack.c.l.b16 %v1281
        %v1410 = vunpack.c.l.b16 %v1282
        %v1411 = vunpack.c.l.b16 %v1283
        %v1412 = vunpack.c.l.b16 %v1284
        %v1413 = vunpack.c.l.b16 %v1285
        %v1414 = vunpack.c.l.b16 %v1286
        %v1415 = vunpack.c.l.b16 %v1287
        %v1416 = vunpack.c.l.b16 %v1288
        %v1417 = vunpack.c.l.b16 %v1289
        %v1418 = vunpack.c.l.b16 %v1290
        %v1419 = vunpack.c.l.b16 %v1291
        %v1420 = vunpack.c.l.b16 %v1292
        %v1421 = vunpack.c.l.b16 %v1293
        %v1422 = vunpack.c.l.b16 %v1294
        %v1423 = vunpack.c.l.b16 %v1295
        %v1424 = vunpack.c.l.b16 %v1296
        %v1425 = vunpack.c.l.b16 %v1297
        %v1426 = vunpack.c.l.b16 %v1298
        %v1427 = vunpack.c.l.b16 %v1299
        %v1428 = vunpack.c.l.b16 %v1300
        %v1429 = vunpack.c.l.b16 %v1301
        %v1430 = vunpack.c.l.b16 %v1302
        %v1431 = vunpack.c.l.b16 %v1303
        %v1432 = vunpack.c.l.b16 %v1304
        %v1433 = vunpack.c.l.b16 %v1305
        %v1434 = vunpack.c.l.b16 %v1306
        %v1435 = vunpack.c.l.b16 %v1307
        %v1436 = vunpack.c.l.b16 %v1308
        %v1437 = vunpack.c.l.b16 %v1309
        %v1438 = vunpack.c.l.b16 %v1310
        %v1439 = vunpack.c.l.b16 %v1311
        %v1440 = vunpack.c.l.b16 %v1312
        %v1441 = vunpack.c.l.b16 %v1313
        %v1442 = vunpack.c.l.b16 %v1314
        %v1443 = vunpack.c.l.b16 %v1315
        %v1444 = vunpack.c.l.b16 %v1316
        %v1445 = vunpack.c.l.b16 %v1317
        %v1446 = vunpack.c.l.b16 %v1318
        %v1447 = vunpack.c.l.b16 %v1319
        %v1448 = vunpack.c.l.b16 %v1320
        %v1449 = vunpack.c.l.b16 %v1321
        %v1450 = vunpack.c.l.b16 %v1322
        %v1451 = vunpack.c.l.b16 %v1323
        %v1452 = vunpack.c.l.b16 %v1324
        %v1453 = vunpack.c.l.b16 %v1325
        %v1454 = vunpack.c.l.b16 %v1326
        %v1455 = vunpack.c.l.b16 %v1327
        %v1456 = vunpack.c.l.b16 %v1328
        %v1457 = vunpack.c.l.b16 %v1329
        %v1458 = vunpack.c.l.b16 %v1330
        %v1459 = vpack.c.b16 %v1396, %v1395
        %v1460 = vpack.c.b16 %v1398, %v1397
        %v1461 = vpack.c.b16 %v1400, %v1399
        %v1462 = vpack.c.b16 %v1402, %v1401
        %v1463 = vpack.c.b16 %v1404, %v1403
        %v1464 = vpack.c.b16 %v1406, %v1405
        %v1465 = vpack.c.b16 %v1408, %v1407
        %v1466 = vpack.c.b16 %v1410, %v1409
        %v1467 = vpack.c.b16 %v1412, %v1411
        %v1468 = vpack.c.b16 %v1414, %v1413
        %v1469 = vpack.c.b16 %v1416, %v1415
        %v1470 = vpack.c.b16 %v1418, %v1417
        %v1471 = vpack.c.b16 %v1420, %v1419
        %v1472 = vpack.c.b16 %v1422, %v1421
        %v1473 = vpack.c.b16 %v1424, %v1423
        %v1474 = vpack.c.b16 %v1426, %v1425
        %v1475 = vpack.c.b16 %v1428, %v1427
        %v1476 = vpack.c.b16 %v1430, %v1429
        %v1477 = vpack.c.b16 %v1432, %v1431
        %v1478 = vpack.c.b16 %v1434, %v1433
        %v1479 = vpack.c.b16 %v1436, %v1435
        %v1480 = vpack.c.b16 %v1438, %v1437
        %v1481 = vpack.c.b16 %v1440, %v1439
        %v1482 = vpack.c.b16 %v1442, %v1441
        %v1483 = vpack.c.b16 %v1444, %v1443
        %v1484 = vpack.c.b16 %v1446, %v1445
        %v1485 = vpack.c.b16 %v1448, %v1447
        %v1486 = vpack.c.b16 %v1450, %v1449
        %v1487 = vpack.c.b16 %v1452, %v1451
        %v1488 = vpack.c.b16 %v1454, %v1453
        %v1489 = vpack.c.b16 %v1456, %v1455
        %v1490 = vpack.c.b16 %v1458, %v1457
        %1523 = vmatprep.subr.bf16.mxu0 0
        %1524 = vmatpush1.bf16.msra.mxu0 %v1459
        %1525 = vmatprep.subr.bf16.mxu0 0
        %1526 = vmatpush1.bf16.msra.mxu0 %v1460
        %1527 = vmatprep.subr.bf16.mxu0 0
        %1528 = vmatpush1.bf16.msra.mxu0 %v1461
        %1529 = vmatprep.subr.bf16.mxu0 0
        %1530 = vmatpush1.bf16.msra.mxu0 %v1462
        %1531 = vmatprep.subr.bf16.mxu0 0
        %1532 = vmatpush1.bf16.msra.mxu0 %v1463
        %1533 = vmatprep.subr.bf16.mxu0 0
        %1534 = vmatpush1.bf16.msra.mxu0 %v1464
        %1535 = vmatprep.subr.bf16.mxu0 0
        %1536 = vmatpush1.bf16.msra.mxu0 %v1465
        %1537 = vmatprep.subr.bf16.mxu0 0
        %1538 = vmatpush1.bf16.msra.mxu0 %v1466
        %1539 = vmatprep.subr.bf16.mxu0 0
        %1540 = vmatpush1.bf16.msra.mxu0 %v1467
        %1541 = vmatprep.subr.bf16.mxu0 0
        %1542 = vmatpush1.bf16.msra.mxu0 %v1468
        %1543 = vmatprep.subr.bf16.mxu0 0
        %1544 = vmatpush1.bf16.msra.mxu0 %v1469
        %1545 = vmatprep.subr.bf16.mxu0 0
        %1546 = vmatpush1.bf16.msra.mxu0 %v1470
        %1547 = vmatprep.subr.bf16.mxu0 0
        %1548 = vmatpush1.bf16.msra.mxu0 %v1471
        %1549 = vmatprep.subr.bf16.mxu0 0
        %1550 = vmatpush1.bf16.msra.mxu0 %v1472
        %1551 = vmatprep.subr.bf16.mxu0 0
        %1552 = vmatpush1.bf16.msra.mxu0 %v1473
        %1553 = vmatprep.subr.bf16.mxu0 0
        %1554 = vmatpush1.bf16.msra.mxu0 %v1474
        %1555 = vmatprep.mubr.bf16.mxu0 %v1246
        %1556 = vmatmul.mubr.bf16.gmra.mrb[0].mxu0 %v734
        %v1557 = vpop.f32.mrb[0].mxu0
        %v1558 = vadd.f32 %v826, %v1557
        %v1559 = vpop.f32.mrb[0].mxu0
        %v1560 = vpop.f32.mrb[0].mxu0
        %v1561 = vadd.f32 %v826, %v1560
        %v1562 = vpop.f32.mrb[0].mxu0
        %1563 = vmatprep.mubr.bf16.mxu0 %v1247
        %1564 = vmatmul.mubr.bf16.gmra.mrb[0].mxu0 %v735
        %v1565 = vpop.f32.mrb[0].mxu0
        %v1566 = vadd.f32 %v826, %v1565
        %v1567 = vpop.f32.mrb[0].mxu0
        %v1568 = vpop.f32.mrb[0].mxu0
        %v1569 = vadd.f32 %v826, %v1568
        %v1570 = vpop.f32.mrb[0].mxu0
        %1571 = vmatprep.mubr.bf16.mxu0 %v1248
        %1572 = vmatmul.mubr.bf16.gmra.mrb[0].mxu0 %v736
        %v1573 = vpop.f32.mrb[0].mxu0
        %v1574 = vadd.f32 %v826, %v1573
        %v1575 = vpop.f32.mrb[0].mxu0
        %v1576 = vpop.f32.mrb[0].mxu0
        %v1577 = vadd.f32 %v826, %v1576
        %v1578 = vpop.f32.mrb[0].mxu0
        %1579 = vmatprep.mubr.bf16.mxu0 %v1249
        %1580 = vmatmul.mubr.bf16.gmra.mrb[0].mxu0 %v737
        %v1581 = vpop.f32.mrb[0].mxu0
        %v1582 = vadd.f32 %v826, %v1581
        %v1583 = vpop.f32.mrb[0].mxu0
        %v1584 = vpop.f32.mrb[0].mxu0
        %v1585 = vadd.f32 %v826, %v1584
        %v1586 = vpop.f32.mrb[0].mxu0
        %1587 = vmatprep.mubr.bf16.mxu0 %v1250
        %1588 = vmatmul.mubr.bf16.gmra.mrb[0].mxu0 %v738
        %v1589 = vpop.f32.mrb[0].mxu0
        %v1590 = vadd.f32 %v826, %v1589
        %v1591 = vpop.f32.mrb[0].mxu0
        %v1592 = vpop.f32.mrb[0].mxu0
        %v1593 = vadd.f32 %v826, %v1592
        %v1594 = vpop.f32.mrb[0].mxu0
        %1595 = vmatprep.mubr.bf16.mxu0 %v1251
        %1596 = vmatmul.mubr.bf16.gmra.mrb[0].mxu0 %v739
        %v1597 = vpop.f32.mrb[0].mxu0
        %v1598 = vadd.f32 %v826, %v1597
        %v1599 = vpop.f32.mrb[0].mxu0
        %v1600 = vpop.f32.mrb[0].mxu0
        %v1601 = vadd.f32 %v826, %v1600
        %v1602 = vpop.f32.mrb[0].mxu0
        %1603 = vmatprep.mubr.bf16.mxu0 %v1252
        %1604 = vmatmul.mubr.bf16.gmra.mrb[0].mxu0 %v740
        %v1605 = vpop.f32.mrb[0].mxu0
        %v1606 = vadd.f32 %v826, %v1605
        %v1607 = vpop.f32.mrb[0].mxu0
        %v1608 = vpop.f32.mrb[0].mxu0
        %v1609 = vadd.f32 %v826, %v1608
        %v1610 = vpop.f32.mrb[0].mxu0
        %1611 = vmatprep.mubr.bf16.mxu0 %v1253
        %1612 = vmatmul.mubr.bf16.gmra.mrb[0].mxu0 %v741
        %v1613 = vpop.f32.mrb[0].mxu0
        %v1614 = vadd.f32 %v826, %v1613
        %v1615 = vpop.f32.mrb[0].mxu0
        %v1616 = vpop.f32.mrb[0].mxu0
        %v1617 = vadd.f32 %v826, %v1616
        %v1618 = vpop.f32.mrb[0].mxu0
        %1619 = vdwg.mxu0
        %1620 = vmatprep.subr.bf16.mxu0 0
        %1621 = vmatpush1.bf16.msra.mxu0 %v1475
        %1622 = vmatprep.subr.bf16.mxu0 0
        %1623 = vmatpush1.bf16.msra.mxu0 %v1476
        %1624 = vmatprep.subr.bf16.mxu0 0
        %1625 = vmatpush1.bf16.msra.mxu0 %v1477
        %1626 = vmatprep.subr.bf16.mxu0 0
        %1627 = vmatpush1.bf16.msra.mxu0 %v1478
        %1628 = vmatprep.subr.bf16.mxu0 0
        %1629 = vmatpush1.bf16.msra.mxu0 %v1479
        %1630 = vmatprep.subr.bf16.mxu0 0
        %1631 = vmatpush1.bf16.msra.mxu0 %v1480
        %1632 = vmatprep.subr.bf16.mxu0 0
        %1633 = vmatpush1.bf16.msra.mxu0 %v1481
        %1634 = vmatprep.subr.bf16.mxu0 0
        %1635 = vmatpush1.bf16.msra.mxu0 %v1482
        %1636 = vmatprep.subr.bf16.mxu0 0
        %1637 = vmatpush1.bf16.msra.mxu0 %v1483
        %1638 = vmatprep.subr.bf16.mxu0 0
        %1639 = vmatpush1.bf16.msra.mxu0 %v1484
        %1640 = vmatprep.subr.bf16.mxu0 0
        %1641 = vmatpush1.bf16.msra.mxu0 %v1485
        %1642 = vmatprep.subr.bf16.mxu0 0
        %1643 = vmatpush1.bf16.msra.mxu0 %v1486
        %1644 = vmatprep.subr.bf16.mxu0 0
        %1645 = vmatpush1.bf16.msra.mxu0 %v1487
        %1646 = vmatprep.subr.bf16.mxu0 0
        %1647 = vmatpush1.bf16.msra.mxu0 %v1488
        %1648 = vmatprep.subr.bf16.mxu0 0
        %1649 = vmatpush1.bf16.msra.mxu0 %v1489
        %1650 = vmatprep.subr.bf16.mxu0 0
        %1651 = vmatpush1.bf16.msra.mxu0 %v1490
        %1652 = vmatprep.mubr.bf16.mxu0 %v1247
        %1653 = vmatmul.mubr.bf16.gmra.mrb[0].mxu0 %v735
        %v1654 = vpop.f32.mrb[0].mxu0
        %v1655 = vadd.f32 %v1558, %v1654
        %v1656 = vpop.f32.mrb[0].mxu0
        %v1657 = vpop.f32.mrb[0].mxu0
        %v1658 = vadd.f32 %v1561, %v1657
        %v1659 = vpop.f32.mrb[0].mxu0
        %1660 = vmatprep.mubr.bf16.mxu0 %v1248
        %1661 = vmatmul.mubr.bf16.gmra.mrb[0].mxu0 %v736
        %v1662 = vpop.f32.mrb[0].mxu0
        %v1663 = vadd.f32 %v1566, %v1662
        %v1664 = vpop.f32.mrb[0].mxu0
        %v1665 = vpop.f32.mrb[0].mxu0
        %v1666 = vadd.f32 %v1569, %v1665
        %v1667 = vpop.f32.mrb[0].mxu0
        %1668 = vmatprep.mubr.bf16.mxu0 %v1249
        %1669 = vmatmul.mubr.bf16.gmra.mrb[0].mxu0 %v737
        %v1670 = vpop.f32.mrb[0].mxu0
        %v1671 = vadd.f32 %v1574, %v1670
        %v1672 = vpop.f32.mrb[0].mxu0
        %v1673 = vpop.f32.mrb[0].mxu0
        %v1674 = vadd.f32 %v1577, %v1673
        %v1675 = vpop.f32.mrb[0].mxu0
        %1676 = vmatprep.mubr.bf16.mxu0 %v1250
        %1677 = vmatmul.mubr.bf16.gmra.mrb[0].mxu0 %v738
        %v1678 = vpop.f32.mrb[0].mxu0
        %v1679 = vadd.f32 %v1582, %v1678
        %v1680 = vpop.f32.mrb[0].mxu0
        %v1681 = vpop.f32.mrb[0].mxu0
        %v1682 = vadd.f32 %v1585, %v1681
        %v1683 = vpop.f32.mrb[0].mxu0
        %1684 = vmatprep.mubr.bf16.mxu0 %v1251
        %1685 = vmatmul.mubr.bf16.gmra.mrb[0].mxu0 %v739
        %v1686 = vpop.f32.mrb[0].mxu0
        %v1687 = vadd.f32 %v1590, %v1686
        %v1688 = vpop.f32.mrb[0].mxu0
        %v1689 = vpop.f32.mrb[0].mxu0
        %v1690 = vadd.f32 %v1593, %v1689
        %v1691 = vpop.f32.mrb[0].mxu0
        %1692 = vmatprep.mubr.bf16.mxu0 %v1252
        %1693 = vmatmul.mubr.bf16.gmra.mrb[0].mxu0 %v740
        %v1694 = vpop.f32.mrb[0].mxu0
        %v1695 = vadd.f32 %v1598, %v1694
        %v1696 = vpop.f32.mrb[0].mxu0
        %v1697 = vpop.f32.mrb[0].mxu0
        %v1698 = vadd.f32 %v1601, %v1697
        %v1699 = vpop.f32.mrb[0].mxu0
        %1700 = vmatprep.mubr.bf16.mxu0 %v1253
        %1701 = vmatmul.mubr.bf16.gmra.mrb[0].mxu0 %v741
        %v1702 = vpop.f32.mrb[0].mxu0
        %v1703 = vadd.f32 %v1606, %v1702
        %v1704 = vpop.f32.mrb[0].mxu0
        %v1705 = vpop.f32.mrb[0].mxu0
        %v1706 = vadd.f32 %v1609, %v1705
        %v1707 = vpop.f32.mrb[0].mxu0
        %1708 = vmatprep.mubr.bf16.mxu0 %v1264
        %1709 = vmatmul.mubr.bf16.gmra.mrb[0].mxu0 %v756
        %v1710 = vpop.f32.mrb[0].mxu0
        %v1711 = vadd.f32 %v1614, %v1710
        %v1712 = vpop.f32.mrb[0].mxu0
        %v1713 = vpop.f32.mrb[0].mxu0
        %v1714 = vadd.f32 %v1617, %v1713
        %v1715 = vpop.f32.mrb[0].mxu0
        %1716 = vdwg.mxu0
        %s1717 = scalar_lea.vmem %s270, 128 [#allocation2]
        %1718 = vst [vmem:[%s1717] sm:$0xff] %v1655
        %1719 = vst [vmem:[%s1717 + $0x8] sm:$0xff] %v1658
        %1720 = vst [vmem:[%s1717 + $0x10] sm:$0xff] %v1663
        %1721 = vst [vmem:[%s1717 + $0x18] sm:$0xff] %v1666
        %1722 = vst [vmem:[%s1717 + $0x20] sm:$0xff] %v1671
        %1723 = vst [vmem:[%s1717 + $0x28] sm:$0xff] %v1674
        %1724 = vst [vmem:[%s1717 + $0x30] sm:$0xff] %v1679
        %1725 = vst [vmem:[%s1717 + $0x38] sm:$0xff] %v1682
        %1726 = vst [vmem:[%s1717 + $0x40] sm:$0xff] %v1687
        %1727 = vst [vmem:[%s1717 + $0x48] sm:$0xff] %v1690
        %1728 = vst [vmem:[%s1717 + $0x50] sm:$0xff] %v1695
        %1729 = vst [vmem:[%s1717 + $0x58] sm:$0xff] %v1698
        %1730 = vst [vmem:[%s1717 + $0x60] sm:$0xff] %v1703
        %1731 = vst [vmem:[%s1717 + $0x68] sm:$0xff] %v1706
        %1732 = vst [vmem:[%s1717 + $0x70] sm:$0xff] %v1711
        %1733 = vst [vmem:[%s1717 + $0x78] sm:$0xff] %v1714
        %v1734 = vunpack.c.l.b16 %v336
        %v1735 = vunpack.c.l.b16 %v337
        %v1736 = vpack.c.b16 %v1735, %v1734
        %v1738 = vunpack.c.l.b16 %v664
        %v1739 = vunpack.c.l.b16 %v674
        %v1740 = vpack.c.b16 %v1739, %v1738
        %s1742 = scalar_lea.vmem %s2, 512
        %v1743 = vld [vmem:[%s1742] sm:$0xf]
        %v1744 = vld [vmem:[%s1742 + $0x4] sm:$0xf]
        %v1745 = vld [vmem:[%s1742 + $0x8] sm:$0xf]
        %v1746 = vld [vmem:[%s1742 + $0xc] sm:$0xf]
        %v1747 = vld [vmem:[%s1742 + $0x10] sm:$0xf]
        %v1748 = vld [vmem:[%s1742 + $0x14] sm:$0xf]
        %v1749 = vld [vmem:[%s1742 + $0x18] sm:$0xf]
        %v1750 = vld [vmem:[%s1742 + $0x1c] sm:$0xf]
        %v1751 = vld [vmem:[%s1742 + $0x20] sm:$0xf]
        %v1752 = vld [vmem:[%s1742 + $0x24] sm:$0xf]
        %v1753 = vld [vmem:[%s1742 + $0x28] sm:$0xf]
        %v1754 = vld [vmem:[%s1742 + $0x2c] sm:$0xf]
        %v1755 = vld [vmem:[%s1742 + $0x30] sm:$0xf]
        %v1756 = vld [vmem:[%s1742 + $0x34] sm:$0xf]
        %v1757 = vld [vmem:[%s1742 + $0x38] sm:$0xf]
        %v1758 = vld [vmem:[%s1742 + $0x3c] sm:$0xf]
        %v1759 = vld [vmem:[%s1742 + $0x40] sm:$0xf]
        %v1760 = vld [vmem:[%s1742 + $0x44] sm:$0xf]
        %v1761 = vld [vmem:[%s1742 + $0x48] sm:$0xf]
        %v1762 = vld [vmem:[%s1742 + $0x4c] sm:$0xf]
        %v1763 = vld [vmem:[%s1742 + $0x50] sm:$0xf]
        %v1764 = vld [vmem:[%s1742 + $0x54] sm:$0xf]
        %v1765 = vld [vmem:[%s1742 + $0x58] sm:$0xf]
        %v1766 = vld [vmem:[%s1742 + $0x5c] sm:$0xf]
        %v1767 = vld [vmem:[%s1742 + $0x60] sm:$0xf]
        %v1768 = vld [vmem:[%s1742 + $0x64] sm:$0xf]
        %v1769 = vld [vmem:[%s1742 + $0x68] sm:$0xf]
        %v1770 = vld [vmem:[%s1742 + $0x6c] sm:$0xf]
        %v1771 = vld [vmem:[%s1742 + $0x70] sm:$0xf]
        %v1772 = vld [vmem:[%s1742 + $0x74] sm:$0xf]
        %v1773 = vld [vmem:[%s1742 + $0x78] sm:$0xf]
        %v1774 = vld [vmem:[%s1742 + $0x7c] sm:$0xf]
        %v1775 = vld [vmem:[%s1742 + $0x80] sm:$0xf]
        %v1776 = vld [vmem:[%s1742 + $0x84] sm:$0xf]
        %v1777 = vld [vmem:[%s1742 + $0x88] sm:$0xf]
        %v1778 = vld [vmem:[%s1742 + $0x8c] sm:$0xf]
        %v1779 = vld [vmem:[%s1742 + $0x90] sm:$0xf]
        %v1780 = vld [vmem:[%s1742 + $0x94] sm:$0xf]
        %v1781 = vld [vmem:[%s1742 + $0x98] sm:$0xf]
        %v1782 = vld [vmem:[%s1742 + $0x9c] sm:$0xf]
        %v1783 = vld [vmem:[%s1742 + $0xa0] sm:$0xf]
        %v1784 = vld [vmem:[%s1742 + $0xa4] sm:$0xf]
        %v1785 = vld [vmem:[%s1742 + $0xa8] sm:$0xf]
        %v1786 = vld [vmem:[%s1742 + $0xac] sm:$0xf]
        %v1787 = vld [vmem:[%s1742 + $0xb0] sm:$0xf]
        %v1788 = vld [vmem:[%s1742 + $0xb4] sm:$0xf]
        %v1789 = vld [vmem:[%s1742 + $0xb8] sm:$0xf]
        %v1790 = vld [vmem:[%s1742 + $0xbc] sm:$0xf]
        %v1791 = vld [vmem:[%s1742 + $0xc0] sm:$0xf]
        %v1792 = vld [vmem:[%s1742 + $0xc4] sm:$0xf]
        %v1793 = vld [vmem:[%s1742 + $0xc8] sm:$0xf]
        %v1794 = vld [vmem:[%s1742 + $0xcc] sm:$0xf]
        %v1795 = vld [vmem:[%s1742 + $0xd0] sm:$0xf]
        %v1796 = vld [vmem:[%s1742 + $0xd4] sm:$0xf]
        %v1797 = vld [vmem:[%s1742 + $0xd8] sm:$0xf]
        %v1798 = vld [vmem:[%s1742 + $0xdc] sm:$0xf]
        %v1799 = vld [vmem:[%s1742 + $0xe0] sm:$0xf]
        %v1800 = vld [vmem:[%s1742 + $0xe4] sm:$0xf]
        %v1801 = vld [vmem:[%s1742 + $0xe8] sm:$0xf]
        %v1802 = vld [vmem:[%s1742 + $0xec] sm:$0xf]
        %v1803 = vld [vmem:[%s1742 + $0xf0] sm:$0xf]
        %v1804 = vld [vmem:[%s1742 + $0xf4] sm:$0xf]
        %v1805 = vld [vmem:[%s1742 + $0xf8] sm:$0xf]
        %v1806 = vld [vmem:[%s1742 + $0xfc] sm:$0xf]
        %v1871 = vunpack.c.l.b16 %v1743
        %v1872 = vunpack.c.l.b16 %v1744
        %v1873 = vunpack.c.l.b16 %v1745
        %v1874 = vunpack.c.l.b16 %v1746
        %v1875 = vunpack.c.l.b16 %v1747
        %v1876 = vunpack.c.l.b16 %v1748
        %v1877 = vunpack.c.l.b16 %v1749
        %v1878 = vunpack.c.l.b16 %v1750
        %v1879 = vunpack.c.l.b16 %v1751
        %v1880 = vunpack.c.l.b16 %v1752
        %v1881 = vunpack.c.l.b16 %v1753
        %v1882 = vunpack.c.l.b16 %v1754
        %v1883 = vunpack.c.l.b16 %v1755
        %v1884 = vunpack.c.l.b16 %v1756
        %v1885 = vunpack.c.l.b16 %v1757
        %v1886 = vunpack.c.l.b16 %v1758
        %v1887 = vunpack.c.l.b16 %v1759
        %v1888 = vunpack.c.l.b16 %v1760
        %v1889 = vunpack.c.l.b16 %v1761
        %v1890 = vunpack.c.l.b16 %v1762
        %v1891 = vunpack.c.l.b16 %v1763
        %v1892 = vunpack.c.l.b16 %v1764
        %v1893 = vunpack.c.l.b16 %v1765
        %v1894 = vunpack.c.l.b16 %v1766
        %v1895 = vunpack.c.l.b16 %v1767
        %v1896 = vunpack.c.l.b16 %v1768
        %v1897 = vunpack.c.l.b16 %v1769
        %v1898 = vunpack.c.l.b16 %v1770
        %v1899 = vunpack.c.l.b16 %v1771
        %v1900 = vunpack.c.l.b16 %v1772
        %v1901 = vunpack.c.l.b16 %v1773
        %v1902 = vunpack.c.l.b16 %v1774
        %v1903 = vunpack.c.l.b16 %v1775
        %v1904 = vunpack.c.l.b16 %v1776
        %v1905 = vunpack.c.l.b16 %v1777
        %v1906 = vunpack.c.l.b16 %v1778
        %v1907 = vunpack.c.l.b16 %v1779
        %v1908 = vunpack.c.l.b16 %v1780
        %v1909 = vunpack.c.l.b16 %v1781
        %v1910 = vunpack.c.l.b16 %v1782
        %v1911 = vunpack.c.l.b16 %v1783
        %v1912 = vunpack.c.l.b16 %v1784
        %v1913 = vunpack.c.l.b16 %v1785
        %v1914 = vunpack.c.l.b16 %v1786
        %v1915 = vunpack.c.l.b16 %v1787
        %v1916 = vunpack.c.l.b16 %v1788
        %v1917 = vunpack.c.l.b16 %v1789
        %v1918 = vunpack.c.l.b16 %v1790
        %v1919 = vunpack.c.l.b16 %v1791
        %v1920 = vunpack.c.l.b16 %v1792
        %v1921 = vunpack.c.l.b16 %v1793
        %v1922 = vunpack.c.l.b16 %v1794
        %v1923 = vunpack.c.l.b16 %v1795
        %v1924 = vunpack.c.l.b16 %v1796
        %v1925 = vunpack.c.l.b16 %v1797
        %v1926 = vunpack.c.l.b16 %v1798
        %v1927 = vunpack.c.l.b16 %v1799
        %v1928 = vunpack.c.l.b16 %v1800
        %v1929 = vunpack.c.l.b16 %v1801
        %v1930 = vunpack.c.l.b16 %v1802
        %v1931 = vunpack.c.l.b16 %v1803
        %v1932 = vunpack.c.l.b16 %v1804
        %v1933 = vunpack.c.l.b16 %v1805
        %v1934 = vunpack.c.l.b16 %v1806
        %v1935 = vpack.c.b16 %v1872, %v1871
        %v1936 = vpack.c.b16 %v1874, %v1873
        %v1937 = vpack.c.b16 %v1876, %v1875
        %v1938 = vpack.c.b16 %v1878, %v1877
        %v1939 = vpack.c.b16 %v1880, %v1879
        %v1940 = vpack.c.b16 %v1882, %v1881
        %v1941 = vpack.c.b16 %v1884, %v1883
        %v1942 = vpack.c.b16 %v1886, %v1885
        %v1943 = vpack.c.b16 %v1888, %v1887
        %v1944 = vpack.c.b16 %v1890, %v1889
        %v1945 = vpack.c.b16 %v1892, %v1891
        %v1946 = vpack.c.b16 %v1894, %v1893
        %v1947 = vpack.c.b16 %v1896, %v1895
        %v1948 = vpack.c.b16 %v1898, %v1897
        %v1949 = vpack.c.b16 %v1900, %v1899
        %v1950 = vpack.c.b16 %v1902, %v1901
        %v1951 = vpack.c.b16 %v1904, %v1903
        %v1952 = vpack.c.b16 %v1906, %v1905
        %v1953 = vpack.c.b16 %v1908, %v1907
        %v1954 = vpack.c.b16 %v1910, %v1909
        %v1955 = vpack.c.b16 %v1912, %v1911
        %v1956 = vpack.c.b16 %v1914, %v1913
        %v1957 = vpack.c.b16 %v1916, %v1915
        %v1958 = vpack.c.b16 %v1918, %v1917
        %v1959 = vpack.c.b16 %v1920, %v1919
        %v1960 = vpack.c.b16 %v1922, %v1921
        %v1961 = vpack.c.b16 %v1924, %v1923
        %v1962 = vpack.c.b16 %v1926, %v1925
        %v1963 = vpack.c.b16 %v1928, %v1927
        %v1964 = vpack.c.b16 %v1930, %v1929
        %v1965 = vpack.c.b16 %v1932, %v1931
        %v1966 = vpack.c.b16 %v1934, %v1933
        %1999 = vmatprep.subr.bf16.mxu0 0
        %2000 = vmatpush1.bf16.msra.mxu0 %v1935
        %2001 = vmatprep.subr.bf16.mxu0 0
        %2002 = vmatpush1.bf16.msra.mxu0 %v1936
        %2003 = vmatprep.subr.bf16.mxu0 0
        %2004 = vmatpush1.bf16.msra.mxu0 %v1937
        %2005 = vmatprep.subr.bf16.mxu0 0
        %2006 = vmatpush1.bf16.msra.mxu0 %v1938
        %2007 = vmatprep.subr.bf16.mxu0 0
        %2008 = vmatpush1.bf16.msra.mxu0 %v1939
        %2009 = vmatprep.subr.bf16.mxu0 0
        %2010 = vmatpush1.bf16.msra.mxu0 %v1940
        %2011 = vmatprep.subr.bf16.mxu0 0
        %2012 = vmatpush1.bf16.msra.mxu0 %v1941
        %2013 = vmatprep.subr.bf16.mxu0 0
        %2014 = vmatpush1.bf16.msra.mxu0 %v1942
        %2015 = vmatprep.subr.bf16.mxu0 0
        %2016 = vmatpush1.bf16.msra.mxu0 %v1943
        %2017 = vmatprep.subr.bf16.mxu0 0
        %2018 = vmatpush1.bf16.msra.mxu0 %v1944
        %2019 = vmatprep.subr.bf16.mxu0 0
        %2020 = vmatpush1.bf16.msra.mxu0 %v1945
        %2021 = vmatprep.subr.bf16.mxu0 0
        %2022 = vmatpush1.bf16.msra.mxu0 %v1946
        %2023 = vmatprep.subr.bf16.mxu0 0
        %2024 = vmatpush1.bf16.msra.mxu0 %v1947
        %2025 = vmatprep.subr.bf16.mxu0 0
        %2026 = vmatpush1.bf16.msra.mxu0 %v1948
        %2027 = vmatprep.subr.bf16.mxu0 0
        %2028 = vmatpush1.bf16.msra.mxu0 %v1949
        %2029 = vmatprep.subr.bf16.mxu0 0
        %2030 = vmatpush1.bf16.msra.mxu0 %v1950
        %2031 = vmatprep.mubr.bf16.mxu0 %v735
        %2032 = vmatmul.mubr.bf16.gmra.mrb[0].mxu0 %v703
        %v2033 = vpop.f32.mrb[0].mxu0
        %v2034 = vadd.f32 %v826, %v2033
        %v2035 = vpop.f32.mrb[0].mxu0
        %v2036 = vpop.f32.mrb[0].mxu0
        %v2037 = vadd.f32 %v826, %v2036
        %v2038 = vpop.f32.mrb[0].mxu0
        %2039 = vmatprep.mubr.bf16.mxu0 %v736
        %2040 = vmatmul.mubr.bf16.gmra.mrb[0].mxu0 %v704
        %v2041 = vpop.f32.mrb[0].mxu0
        %v2042 = vadd.f32 %v826, %v2041
        %v2043 = vpop.f32.mrb[0].mxu0
        %v2044 = vpop.f32.mrb[0].mxu0
        %v2045 = vadd.f32 %v826, %v2044
        %v2046 = vpop.f32.mrb[0].mxu0
        %2047 = vmatprep.mubr.bf16.mxu0 %v737
        %2048 = vmatmul.mubr.bf16.gmra.mrb[0].mxu0 %v705
        %v2049 = vpop.f32.mrb[0].mxu0
        %v2050 = vadd.f32 %v826, %v2049
        %v2051 = vpop.f32.mrb[0].mxu0
        %v2052 = vpop.f32.mrb[0].mxu0
        %v2053 = vadd.f32 %v826, %v2052
        %v2054 = vpop.f32.mrb[0].mxu0
        %2055 = vmatprep.mubr.bf16.mxu0 %v738
        %2056 = vmatmul.mubr.bf16.gmra.mrb[0].mxu0 %v706
        %v2057 = vpop.f32.mrb[0].mxu0
        %v2058 = vadd.f32 %v826, %v2057
        %v2059 = vpop.f32.mrb[0].mxu0
        %v2060 = vpop.f32.mrb[0].mxu0
        %v2061 = vadd.f32 %v826, %v2060
        %v2062 = vpop.f32.mrb[0].mxu0
        %2063 = vmatprep.mubr.bf16.mxu0 %v739
        %2064 = vmatmul.mubr.bf16.gmra.mrb[0].mxu0 %v707
        %v2065 = vpop.f32.mrb[0].mxu0
        %v2066 = vadd.f32 %v826, %v2065
        %v2067 = vpop.f32.mrb[0].mxu0
        %v2068 = vpop.f32.mrb[0].mxu0
        %v2069 = vadd.f32 %v826, %v2068
        %v2070 = vpop.f32.mrb[0].mxu0
        %2071 = vmatprep.mubr.bf16.mxu0 %v740
        %2072 = vmatmul.mubr.bf16.gmra.mrb[0].mxu0 %v708
        %v2073 = vpop.f32.mrb[0].mxu0
        %v2074 = vadd.f32 %v826, %v2073
        %v2075 = vpop.f32.mrb[0].mxu0
        %v2076 = vpop.f32.mrb[0].mxu0
        %v2077 = vadd.f32 %v826, %v2076
        %v2078 = vpop.f32.mrb[0].mxu0
        %2079 = vmatprep.mubr.bf16.mxu0 %v741
        %2080 = vmatmul.mubr.bf16.gmra.mrb[0].mxu0 %v709
        %v2081 = vpop.f32.mrb[0].mxu0
        %v2082 = vadd.f32 %v826, %v2081
        %v2083 = vpop.f32.mrb[0].mxu0
        %v2084 = vpop.f32.mrb[0].mxu0
        %v2085 = vadd.f32 %v826, %v2084
        %v2086 = vpop.f32.mrb[0].mxu0
        %2087 = vmatprep.mubr.bf16.mxu0 %v756
        %2088 = vmatmul.mubr.bf16.gmra.mrb[0].mxu0 %v752
        %v2089 = vpop.f32.mrb[0].mxu0
        %v2090 = vadd.f32 %v826, %v2089
        %v2091 = vpop.f32.mrb[0].mxu0
        %v2092 = vpop.f32.mrb[0].mxu0
        %v2093 = vadd.f32 %v826, %v2092
        %v2094 = vpop.f32.mrb[0].mxu0
        %2095 = vdwg.mxu0
        %2096 = vmatprep.subr.bf16.mxu0 0
        %2097 = vmatpush1.bf16.msra.mxu0 %v1951
        %2098 = vmatprep.subr.bf16.mxu0 0
        %2099 = vmatpush1.bf16.msra.mxu0 %v1952
        %2100 = vmatprep.subr.bf16.mxu0 0
        %2101 = vmatpush1.bf16.msra.mxu0 %v1953
        %2102 = vmatprep.subr.bf16.mxu0 0
        %2103 = vmatpush1.bf16.msra.mxu0 %v1954
        %2104 = vmatprep.subr.bf16.mxu0 0
        %2105 = vmatpush1.bf16.msra.mxu0 %v1955
        %2106 = vmatprep.subr.bf16.mxu0 0
        %2107 = vmatpush1.bf16.msra.mxu0 %v1956
        %2108 = vmatprep.subr.bf16.mxu0 0
        %2109 = vmatpush1.bf16.msra.mxu0 %v1957
        %2110 = vmatprep.subr.bf16.mxu0 0
        %2111 = vmatpush1.bf16.msra.mxu0 %v1958
        %2112 = vmatprep.subr.bf16.mxu0 0
        %2113 = vmatpush1.bf16.msra.mxu0 %v1959
        %2114 = vmatprep.subr.bf16.mxu0 0
        %2115 = vmatpush1.bf16.msra.mxu0 %v1960
        %2116 = vmatprep.subr.bf16.mxu0 0
        %2117 = vmatpush1.bf16.msra.mxu0 %v1961
        %2118 = vmatprep.subr.bf16.mxu0 0
        %2119 = vmatpush1.bf16.msra.mxu0 %v1962
        %2120 = vmatprep.subr.bf16.mxu0 0
        %2121 = vmatpush1.bf16.msra.mxu0 %v1963
        %2122 = vmatprep.subr.bf16.mxu0 0
        %2123 = vmatpush1.bf16.msra.mxu0 %v1964
        %2124 = vmatprep.subr.bf16.mxu0 0
        %2125 = vmatpush1.bf16.msra.mxu0 %v1965
        %2126 = vmatprep.subr.bf16.mxu0 0
        %2127 = vmatpush1.bf16.msra.mxu0 %v1966
        %2128 = vmatprep.mubr.bf16.mxu0 %v736
        %2129 = vmatmul.mubr.bf16.gmra.mrb[0].mxu0 %v704
        %v2130 = vpop.f32.mrb[0].mxu0
        %v2131 = vadd.f32 %v2034, %v2130
        %v2132 = vpop.f32.mrb[0].mxu0
        %v2133 = vpop.f32.mrb[0].mxu0
        %v2134 = vadd.f32 %v2037, %v2133
        %v2135 = vpop.f32.mrb[0].mxu0
        %2136 = vmatprep.mubr.bf16.mxu0 %v737
        %2137 = vmatmul.mubr.bf16.gmra.mrb[0].mxu0 %v705
        %v2138 = vpop.f32.mrb[0].mxu0
        %v2139 = vadd.f32 %v2042, %v2138
        %v2140 = vpop.f32.mrb[0].mxu0
        %v2141 = vpop.f32.mrb[0].mxu0
        %v2142 = vadd.f32 %v2045, %v2141
        %v2143 = vpop.f32.mrb[0].mxu0
        %2144 = vmatprep.mubr.bf16.mxu0 %v738
        %2145 = vmatmul.mubr.bf16.gmra.mrb[0].mxu0 %v706
        %v2146 = vpop.f32.mrb[0].mxu0
        %v2147 = vadd.f32 %v2050, %v2146
        %v2148 = vpop.f32.mrb[0].mxu0
        %v2149 = vpop.f32.mrb[0].mxu0
        %v2150 = vadd.f32 %v2053, %v2149
        %v2151 = vpop.f32.mrb[0].mxu0
        %2152 = vmatprep.mubr.bf16.mxu0 %v739
        %2153 = vmatmul.mubr.bf16.gmra.mrb[0].mxu0 %v707
        %v2154 = vpop.f32.mrb[0].mxu0
        %v2155 = vadd.f32 %v2058, %v2154
        %v2156 = vpop.f32.mrb[0].mxu0
        %v2157 = vpop.f32.mrb[0].mxu0
        %v2158 = vadd.f32 %v2061, %v2157
        %v2159 = vpop.f32.mrb[0].mxu0
        %2160 = vmatprep.mubr.bf16.mxu0 %v740
        %2161 = vmatmul.mubr.bf16.gmra.mrb[0].mxu0 %v708
        %v2162 = vpop.f32.mrb[0].mxu0
        %v2163 = vadd.f32 %v2066, %v2162
        %v2164 = vpop.f32.mrb[0].mxu0
        %v2165 = vpop.f32.mrb[0].mxu0
        %v2166 = vadd.f32 %v2069, %v2165
        %v2167 = vpop.f32.mrb[0].mxu0
        %2168 = vmatprep.mubr.bf16.mxu0 %v741
        %2169 = vmatmul.mubr.bf16.gmra.mrb[0].mxu0 %v709
        %v2170 = vpop.f32.mrb[0].mxu0
        %v2171 = vadd.f32 %v2074, %v2170
        %v2172 = vpop.f32.mrb[0].mxu0
        %v2173 = vpop.f32.mrb[0].mxu0
        %v2174 = vadd.f32 %v2077, %v2173
        %v2175 = vpop.f32.mrb[0].mxu0
        %2176 = vmatprep.mubr.bf16.mxu0 %v756
        %2177 = vmatmul.mubr.bf16.gmra.mrb[0].mxu0 %v752
        %v2178 = vpop.f32.mrb[0].mxu0
        %v2179 = vadd.f32 %v2082, %v2178
        %v2180 = vpop.f32.mrb[0].mxu0
        %v2181 = vpop.f32.mrb[0].mxu0
        %v2182 = vadd.f32 %v2085, %v2181
        %v2183 = vpop.f32.mrb[0].mxu0
        %2184 = vmatprep.mubr.bf16.mxu0 %v1740
        %2185 = vmatmul.mubr.bf16.gmra.mrb[0].mxu0 %v1736
        %v2186 = vpop.f32.mrb[0].mxu0
        %v2187 = vadd.f32 %v2090, %v2186
        %v2188 = vpop.f32.mrb[0].mxu0
        %v2189 = vpop.f32.mrb[0].mxu0
        %v2190 = vadd.f32 %v2093, %v2189
        %v2191 = vpop.f32.mrb[0].mxu0
        %2192 = vdwg.mxu0
        %s2193 = scalar_lea.vmem %s270, 256 [#allocation2]
        %2194 = vst [vmem:[%s2193] sm:$0xff] %v2131
        %2195 = vst [vmem:[%s2193 + $0x8] sm:$0xff] %v2134
        %2196 = vst [vmem:[%s2193 + $0x10] sm:$0xff] %v2139
        %2197 = vst [vmem:[%s2193 + $0x18] sm:$0xff] %v2142
        %2198 = vst [vmem:[%s2193 + $0x20] sm:$0xff] %v2147
        %2199 = vst [vmem:[%s2193 + $0x28] sm:$0xff] %v2150
        %2200 = vst [vmem:[%s2193 + $0x30] sm:$0xff] %v2155
        %2201 = vst [vmem:[%s2193 + $0x38] sm:$0xff] %v2158
        %2202 = vst [vmem:[%s2193 + $0x40] sm:$0xff] %v2163
        %2203 = vst [vmem:[%s2193 + $0x48] sm:$0xff] %v2166
        %2204 = vst [vmem:[%s2193 + $0x50] sm:$0xff] %v2171
        %2205 = vst [vmem:[%s2193 + $0x58] sm:$0xff] %v2174
        %2206 = vst [vmem:[%s2193 + $0x60] sm:$0xff] %v2179
        %2207 = vst [vmem:[%s2193 + $0x68] sm:$0xff] %v2182
        %2208 = vst [vmem:[%s2193 + $0x70] sm:$0xff] %v2187
        %2209 = vst [vmem:[%s2193 + $0x78] sm:$0xff] %v2190
        %v2210 = vunpack.c.l.b16 %v681
        %v2211 = vunpack.c.l.b16 %v684
        %v2212 = vpack.c.b16 %v2211, %v2210
        %s2214 = scalar_lea.vmem %s2, 768
        %v2215 = vld [vmem:[%s2214] sm:$0xf]
        %v2216 = vld [vmem:[%s2214 + $0x4] sm:$0xf]
        %v2217 = vld [vmem:[%s2214 + $0x8] sm:$0xf]
        %v2218 = vld [vmem:[%s2214 + $0xc] sm:$0xf]
        %v2219 = vld [vmem:[%s2214 + $0x10] sm:$0xf]
        %v2220 = vld [vmem:[%s2214 + $0x14] sm:$0xf]
        %v2221 = vld [vmem:[%s2214 + $0x18] sm:$0xf]
        %v2222 = vld [vmem:[%s2214 + $0x1c] sm:$0xf]
        %v2223 = vld [vmem:[%s2214 + $0x20] sm:$0xf]
        %v2224 = vld [vmem:[%s2214 + $0x24] sm:$0xf]
        %v2225 = vld [vmem:[%s2214 + $0x28] sm:$0xf]
        %v2226 = vld [vmem:[%s2214 + $0x2c] sm:$0xf]
        %v2227 = vld [vmem:[%s2214 + $0x30] sm:$0xf]
        %v2228 = vld [vmem:[%s2214 + $0x34] sm:$0xf]
        %v2229 = vld [vmem:[%s2214 + $0x38] sm:$0xf]
        %v2230 = vld [vmem:[%s2214 + $0x3c] sm:$0xf]
        %v2231 = vld [vmem:[%s2214 + $0x40] sm:$0xf]
        %v2232 = vld [vmem:[%s2214 + $0x44] sm:$0xf]
        %v2233 = vld [vmem:[%s2214 + $0x48] sm:$0xf]
        %v2234 = vld [vmem:[%s2214 + $0x4c] sm:$0xf]
        %v2235 = vld [vmem:[%s2214 + $0x50] sm:$0xf]
        %v2236 = vld [vmem:[%s2214 + $0x54] sm:$0xf]
        %v2237 = vld [vmem:[%s2214 + $0x58] sm:$0xf]
        %v2238 = vld [vmem:[%s2214 + $0x5c] sm:$0xf]
        %v2239 = vld [vmem:[%s2214 + $0x60] sm:$0xf]
        %v2240 = vld [vmem:[%s2214 + $0x64] sm:$0xf]
        %v2241 = vld [vmem:[%s2214 + $0x68] sm:$0xf]
        %v2242 = vld [vmem:[%s2214 + $0x6c] sm:$0xf]
        %v2243 = vld [vmem:[%s2214 + $0x70] sm:$0xf]
        %v2244 = vld [vmem:[%s2214 + $0x74] sm:$0xf]
        %v2245 = vld [vmem:[%s2214 + $0x78] sm:$0xf]
        %v2246 = vld [vmem:[%s2214 + $0x7c] sm:$0xf]
        %v2247 = vld [vmem:[%s2214 + $0x80] sm:$0xf]
        %v2248 = vld [vmem:[%s2214 + $0x84] sm:$0xf]
        %v2249 = vld [vmem:[%s2214 + $0x88] sm:$0xf]
        %v2250 = vld [vmem:[%s2214 + $0x8c] sm:$0xf]
        %v2251 = vld [vmem:[%s2214 + $0x90] sm:$0xf]
        %v2252 = vld [vmem:[%s2214 + $0x94] sm:$0xf]
        %v2253 = vld [vmem:[%s2214 + $0x98] sm:$0xf]
        %v2254 = vld [vmem:[%s2214 + $0x9c] sm:$0xf]
        %v2255 = vld [vmem:[%s2214 + $0xa0] sm:$0xf]
        %v2256 = vld [vmem:[%s2214 + $0xa4] sm:$0xf]
        %v2257 = vld [vmem:[%s2214 + $0xa8] sm:$0xf]
        %v2258 = vld [vmem:[%s2214 + $0xac] sm:$0xf]
        %v2259 = vld [vmem:[%s2214 + $0xb0] sm:$0xf]
        %v2260 = vld [vmem:[%s2214 + $0xb4] sm:$0xf]
        %v2261 = vld [vmem:[%s2214 + $0xb8] sm:$0xf]
        %v2262 = vld [vmem:[%s2214 + $0xbc] sm:$0xf]
        %v2263 = vld [vmem:[%s2214 + $0xc0] sm:$0xf]
        %v2264 = vld [vmem:[%s2214 + $0xc4] sm:$0xf]
        %v2265 = vld [vmem:[%s2214 + $0xc8] sm:$0xf]
        %v2266 = vld [vmem:[%s2214 + $0xcc] sm:$0xf]
        %v2267 = vld [vmem:[%s2214 + $0xd0] sm:$0xf]
        %v2268 = vld [vmem:[%s2214 + $0xd4] sm:$0xf]
        %v2269 = vld [vmem:[%s2214 + $0xd8] sm:$0xf]
        %v2270 = vld [vmem:[%s2214 + $0xdc] sm:$0xf]
        %v2271 = vld [vmem:[%s2214 + $0xe0] sm:$0xf]
        %v2272 = vld [vmem:[%s2214 + $0xe4] sm:$0xf]
        %v2273 = vld [vmem:[%s2214 + $0xe8] sm:$0xf]
        %v2274 = vld [vmem:[%s2214 + $0xec] sm:$0xf]
        %v2275 = vld [vmem:[%s2214 + $0xf0] sm:$0xf]
        %v2276 = vld [vmem:[%s2214 + $0xf4] sm:$0xf]
        %v2277 = vld [vmem:[%s2214 + $0xf8] sm:$0xf]
        %v2278 = vld [vmem:[%s2214 + $0xfc] sm:$0xf]
        %v2343 = vunpack.c.l.b16 %v2215
        %v2344 = vunpack.c.l.b16 %v2216
        %v2345 = vunpack.c.l.b16 %v2217
        %v2346 = vunpack.c.l.b16 %v2218
        %v2347 = vunpack.c.l.b16 %v2219
        %v2348 = vunpack.c.l.b16 %v2220
        %v2349 = vunpack.c.l.b16 %v2221
        %v2350 = vunpack.c.l.b16 %v2222
        %v2351 = vunpack.c.l.b16 %v2223
        %v2352 = vunpack.c.l.b16 %v2224
        %v2353 = vunpack.c.l.b16 %v2225
        %v2354 = vunpack.c.l.b16 %v2226
        %v2355 = vunpack.c.l.b16 %v2227
        %v2356 = vunpack.c.l.b16 %v2228
        %v2357 = vunpack.c.l.b16 %v2229
        %v2358 = vunpack.c.l.b16 %v2230
        %v2359 = vunpack.c.l.b16 %v2231
        %v2360 = vunpack.c.l.b16 %v2232
        %v2361 = vunpack.c.l.b16 %v2233
        %v2362 = vunpack.c.l.b16 %v2234
        %v2363 = vunpack.c.l.b16 %v2235
        %v2364 = vunpack.c.l.b16 %v2236
        %v2365 = vunpack.c.l.b16 %v2237
        %v2366 = vunpack.c.l.b16 %v2238
        %v2367 = vunpack.c.l.b16 %v2239
        %v2368 = vunpack.c.l.b16 %v2240
        %v2369 = vunpack.c.l.b16 %v2241
        %v2370 = vunpack.c.l.b16 %v2242
        %v2371 = vunpack.c.l.b16 %v2243
        %v2372 = vunpack.c.l.b16 %v2244
        %v2373 = vunpack.c.l.b16 %v2245
        %v2374 = vunpack.c.l.b16 %v2246
        %v2375 = vunpack.c.l.b16 %v2247
        %v2376 = vunpack.c.l.b16 %v2248
        %v2377 = vunpack.c.l.b16 %v2249
        %v2378 = vunpack.c.l.b16 %v2250
        %v2379 = vunpack.c.l.b16 %v2251
        %v2380 = vunpack.c.l.b16 %v2252
        %v2381 = vunpack.c.l.b16 %v2253
        %v2382 = vunpack.c.l.b16 %v2254
        %v2383 = vunpack.c.l.b16 %v2255
        %v2384 = vunpack.c.l.b16 %v2256
        %v2385 = vunpack.c.l.b16 %v2257
        %v2386 = vunpack.c.l.b16 %v2258
        %v2387 = vunpack.c.l.b16 %v2259
        %v2388 = vunpack.c.l.b16 %v2260
        %v2389 = vunpack.c.l.b16 %v2261
        %v2390 = vunpack.c.l.b16 %v2262
        %v2391 = vunpack.c.l.b16 %v2263
        %v2392 = vunpack.c.l.b16 %v2264
        %v2393 = vunpack.c.l.b16 %v2265
        %v2394 = vunpack.c.l.b16 %v2266
        %v2395 = vunpack.c.l.b16 %v2267
        %v2396 = vunpack.c.l.b16 %v2268
        %v2397 = vunpack.c.l.b16 %v2269
        %v2398 = vunpack.c.l.b16 %v2270
        %v2399 = vunpack.c.l.b16 %v2271
        %v2400 = vunpack.c.l.b16 %v2272
        %v2401 = vunpack.c.l.b16 %v2273
        %v2402 = vunpack.c.l.b16 %v2274
        %v2403 = vunpack.c.l.b16 %v2275
        %v2404 = vunpack.c.l.b16 %v2276
        %v2405 = vunpack.c.l.b16 %v2277
        %v2406 = vunpack.c.l.b16 %v2278
        %v2407 = vpack.c.b16 %v2344, %v2343
        %v2408 = vpack.c.b16 %v2346, %v2345
        %v2409 = vpack.c.b16 %v2348, %v2347
        %v2410 = vpack.c.b16 %v2350, %v2349
        %v2411 = vpack.c.b16 %v2352, %v2351
        %v2412 = vpack.c.b16 %v2354, %v2353
        %v2413 = vpack.c.b16 %v2356, %v2355
        %v2414 = vpack.c.b16 %v2358, %v2357
        %v2415 = vpack.c.b16 %v2360, %v2359
        %v2416 = vpack.c.b16 %v2362, %v2361
        %v2417 = vpack.c.b16 %v2364, %v2363
        %v2418 = vpack.c.b16 %v2366, %v2365
        %v2419 = vpack.c.b16 %v2368, %v2367
        %v2420 = vpack.c.b16 %v2370, %v2369
        %v2421 = vpack.c.b16 %v2372, %v2371
        %v2422 = vpack.c.b16 %v2374, %v2373
        %v2423 = vpack.c.b16 %v2376, %v2375
        %v2424 = vpack.c.b16 %v2378, %v2377
        %v2425 = vpack.c.b16 %v2380, %v2379
        %v2426 = vpack.c.b16 %v2382, %v2381
        %v2427 = vpack.c.b16 %v2384, %v2383
        %v2428 = vpack.c.b16 %v2386, %v2385
        %v2429 = vpack.c.b16 %v2388, %v2387
        %v2430 = vpack.c.b16 %v2390, %v2389
        %v2431 = vpack.c.b16 %v2392, %v2391
        %v2432 = vpack.c.b16 %v2394, %v2393
        %v2433 = vpack.c.b16 %v2396, %v2395
        %v2434 = vpack.c.b16 %v2398, %v2397
        %v2435 = vpack.c.b16 %v2400, %v2399
        %v2436 = vpack.c.b16 %v2402, %v2401
        %v2437 = vpack.c.b16 %v2404, %v2403
        %v2438 = vpack.c.b16 %v2406, %v2405
        %2471 = vmatprep.subr.bf16.mxu0 0
        %2472 = vmatpush1.bf16.msra.mxu0 %v2407
        %2473 = vmatprep.subr.bf16.mxu0 0
        %2474 = vmatpush1.bf16.msra.mxu0 %v2408
        %2475 = vmatprep.subr.bf16.mxu0 0
        %2476 = vmatpush1.bf16.msra.mxu0 %v2409
        %2477 = vmatprep.subr.bf16.mxu0 0
        %2478 = vmatpush1.bf16.msra.mxu0 %v2410
        %2479 = vmatprep.subr.bf16.mxu0 0
        %2480 = vmatpush1.bf16.msra.mxu0 %v2411
        %2481 = vmatprep.subr.bf16.mxu0 0
        %2482 = vmatpush1.bf16.msra.mxu0 %v2412
        %2483 = vmatprep.subr.bf16.mxu0 0
        %2484 = vmatpush1.bf16.msra.mxu0 %v2413
        %2485 = vmatprep.subr.bf16.mxu0 0
        %2486 = vmatpush1.bf16.msra.mxu0 %v2414
        %2487 = vmatprep.subr.bf16.mxu0 0
        %2488 = vmatpush1.bf16.msra.mxu0 %v2415
        %2489 = vmatprep.subr.bf16.mxu0 0
        %2490 = vmatpush1.bf16.msra.mxu0 %v2416
        %2491 = vmatprep.subr.bf16.mxu0 0
        %2492 = vmatpush1.bf16.msra.mxu0 %v2417
        %2493 = vmatprep.subr.bf16.mxu0 0
        %2494 = vmatpush1.bf16.msra.mxu0 %v2418
        %2495 = vmatprep.subr.bf16.mxu0 0
        %2496 = vmatpush1.bf16.msra.mxu0 %v2419
        %2497 = vmatprep.subr.bf16.mxu0 0
        %2498 = vmatpush1.bf16.msra.mxu0 %v2420
        %2499 = vmatprep.subr.bf16.mxu0 0
        %2500 = vmatpush1.bf16.msra.mxu0 %v2421
        %2501 = vmatprep.subr.bf16.mxu0 0
        %2502 = vmatpush1.bf16.msra.mxu0 %v2422
        %2503 = vmatprep.mubr.bf16.mxu0 %v1247
        %2504 = vmatmul.mubr.bf16.gmra.mrb[0].mxu0 %v735
        %v2505 = vpop.f32.mrb[0].mxu0
        %v2506 = vadd.f32 %v826, %v2505
        %v2507 = vpop.f32.mrb[0].mxu0
        %v2508 = vpop.f32.mrb[0].mxu0
        %v2509 = vadd.f32 %v826, %v2508
        %v2510 = vpop.f32.mrb[0].mxu0
        %2511 = vmatprep.mubr.bf16.mxu0 %v1248
        %2512 = vmatmul.mubr.bf16.gmra.mrb[0].mxu0 %v736
        %v2513 = vpop.f32.mrb[0].mxu0
        %v2514 = vadd.f32 %v826, %v2513
        %v2515 = vpop.f32.mrb[0].mxu0
        %v2516 = vpop.f32.mrb[0].mxu0
        %v2517 = vadd.f32 %v826, %v2516
        %v2518 = vpop.f32.mrb[0].mxu0
        %2519 = vmatprep.mubr.bf16.mxu0 %v1249
        %2520 = vmatmul.mubr.bf16.gmra.mrb[0].mxu0 %v737
        %v2521 = vpop.f32.mrb[0].mxu0
        %v2522 = vadd.f32 %v826, %v2521
        %v2523 = vpop.f32.mrb[0].mxu0
        %v2524 = vpop.f32.mrb[0].mxu0
        %v2525 = vadd.f32 %v826, %v2524
        %v2526 = vpop.f32.mrb[0].mxu0
        %2527 = vmatprep.mubr.bf16.mxu0 %v1250
        %2528 = vmatmul.mubr.bf16.gmra.mrb[0].mxu0 %v738
        %v2529 = vpop.f32.mrb[0].mxu0
        %v2530 = vadd.f32 %v826, %v2529
        %v2531 = vpop.f32.mrb[0].mxu0
        %v2532 = vpop.f32.mrb[0].mxu0
        %v2533 = vadd.f32 %v826, %v2532
        %v2534 = vpop.f32.mrb[0].mxu0
        %2535 = vmatprep.mubr.bf16.mxu0 %v1251
        %2536 = vmatmul.mubr.bf16.gmra.mrb[0].mxu0 %v739
        %v2537 = vpop.f32.mrb[0].mxu0
        %v2538 = vadd.f32 %v826, %v2537
        %v2539 = vpop.f32.mrb[0].mxu0
        %v2540 = vpop.f32.mrb[0].mxu0
        %v2541 = vadd.f32 %v826, %v2540
        %v2542 = vpop.f32.mrb[0].mxu0
        %2543 = vmatprep.mubr.bf16.mxu0 %v1252
        %2544 = vmatmul.mubr.bf16.gmra.mrb[0].mxu0 %v740
        %v2545 = vpop.f32.mrb[0].mxu0
        %v2546 = vadd.f32 %v826, %v2545
        %v2547 = vpop.f32.mrb[0].mxu0
        %v2548 = vpop.f32.mrb[0].mxu0
        %v2549 = vadd.f32 %v826, %v2548
        %v2550 = vpop.f32.mrb[0].mxu0
        %2551 = vmatprep.mubr.bf16.mxu0 %v1253
        %2552 = vmatmul.mubr.bf16.gmra.mrb[0].mxu0 %v741
        %v2553 = vpop.f32.mrb[0].mxu0
        %v2554 = vadd.f32 %v826, %v2553
        %v2555 = vpop.f32.mrb[0].mxu0
        %v2556 = vpop.f32.mrb[0].mxu0
        %v2557 = vadd.f32 %v826, %v2556
        %v2558 = vpop.f32.mrb[0].mxu0
        %2559 = vmatprep.mubr.bf16.mxu0 %v1264
        %2560 = vmatmul.mubr.bf16.gmra.mrb[0].mxu0 %v756
        %v2561 = vpop.f32.mrb[0].mxu0
        %v2562 = vadd.f32 %v826, %v2561
        %v2563 = vpop.f32.mrb[0].mxu0
        %v2564 = vpop.f32.mrb[0].mxu0
        %v2565 = vadd.f32 %v826, %v2564
        %v2566 = vpop.f32.mrb[0].mxu0
        %2567 = vdwg.mxu0
        %2568 = vmatprep.subr.bf16.mxu0 0
        %2569 = vmatpush1.bf16.msra.mxu0 %v2423
        %2570 = vmatprep.subr.bf16.mxu0 0
        %2571 = vmatpush1.bf16.msra.mxu0 %v2424
        %2572 = vmatprep.subr.bf16.mxu0 0
        %2573 = vmatpush1.bf16.msra.mxu0 %v2425
        %2574 = vmatprep.subr.bf16.mxu0 0
        %2575 = vmatpush1.bf16.msra.mxu0 %v2426
        %2576 = vmatprep.subr.bf16.mxu0 0
        %2577 = vmatpush1.bf16.msra.mxu0 %v2427
        %2578 = vmatprep.subr.bf16.mxu0 0
        %2579 = vmatpush1.bf16.msra.mxu0 %v2428
        %2580 = vmatprep.subr.bf16.mxu0 0
        %2581 = vmatpush1.bf16.msra.mxu0 %v2429
        %2582 = vmatprep.subr.bf16.mxu0 0
        %2583 = vmatpush1.bf16.msra.mxu0 %v2430
        %2584 = vmatprep.subr.bf16.mxu0 0
        %2585 = vmatpush1.bf16.msra.mxu0 %v2431
        %2586 = vmatprep.subr.bf16.mxu0 0
        %2587 = vmatpush1.bf16.msra.mxu0 %v2432
        %2588 = vmatprep.subr.bf16.mxu0 0
        %2589 = vmatpush1.bf16.msra.mxu0 %v2433
        %2590 = vmatprep.subr.bf16.mxu0 0
        %2591 = vmatpush1.bf16.msra.mxu0 %v2434
        %2592 = vmatprep.subr.bf16.mxu0 0
        %2593 = vmatpush1.bf16.msra.mxu0 %v2435
        %2594 = vmatprep.subr.bf16.mxu0 0
        %2595 = vmatpush1.bf16.msra.mxu0 %v2436
        %2596 = vmatprep.subr.bf16.mxu0 0
        %2597 = vmatpush1.bf16.msra.mxu0 %v2437
        %2598 = vmatprep.subr.bf16.mxu0 0
        %2599 = vmatpush1.bf16.msra.mxu0 %v2438
        %2600 = vmatprep.mubr.bf16.mxu0 %v1248
        %2601 = vmatmul.mubr.bf16.gmra.mrb[0].mxu0 %v736
        %v2602 = vpop.f32.mrb[0].mxu0
        %v2603 = vadd.f32 %v2506, %v2602
        %v2604 = vpop.f32.mrb[0].mxu0
        %v2605 = vpop.f32.mrb[0].mxu0
        %v2606 = vadd.f32 %v2509, %v2605
        %v2607 = vpop.f32.mrb[0].mxu0
        %2608 = vmatprep.mubr.bf16.mxu0 %v1249
        %2609 = vmatmul.mubr.bf16.gmra.mrb[0].mxu0 %v737
        %v2610 = vpop.f32.mrb[0].mxu0
        %v2611 = vadd.f32 %v2514, %v2610
        %v2612 = vpop.f32.mrb[0].mxu0
        %v2613 = vpop.f32.mrb[0].mxu0
        %v2614 = vadd.f32 %v2517, %v2613
        %v2615 = vpop.f32.mrb[0].mxu0
        %2616 = vmatprep.mubr.bf16.mxu0 %v1250
        %2617 = vmatmul.mubr.bf16.gmra.mrb[0].mxu0 %v738
        %v2618 = vpop.f32.mrb[0].mxu0
        %v2619 = vadd.f32 %v2522, %v2618
        %v2620 = vpop.f32.mrb[0].mxu0
        %v2621 = vpop.f32.mrb[0].mxu0
        %v2622 = vadd.f32 %v2525, %v2621
        %v2623 = vpop.f32.mrb[0].mxu0
        %2624 = vmatprep.mubr.bf16.mxu0 %v1251
        %2625 = vmatmul.mubr.bf16.gmra.mrb[0].mxu0 %v739
        %v2626 = vpop.f32.mrb[0].mxu0
        %v2627 = vadd.f32 %v2530, %v2626
        %v2628 = vpop.f32.mrb[0].mxu0
        %v2629 = vpop.f32.mrb[0].mxu0
        %v2630 = vadd.f32 %v2533, %v2629
        %v2631 = vpop.f32.mrb[0].mxu0
        %2632 = vmatprep.mubr.bf16.mxu0 %v1252
        %2633 = vmatmul.mubr.bf16.gmra.mrb[0].mxu0 %v740
        %v2634 = vpop.f32.mrb[0].mxu0
        %v2635 = vadd.f32 %v2538, %v2634
        %v2636 = vpop.f32.mrb[0].mxu0
        %v2637 = vpop.f32.mrb[0].mxu0
        %v2638 = vadd.f32 %v2541, %v2637
        %v2639 = vpop.f32.mrb[0].mxu0
        %2640 = vmatprep.mubr.bf16.mxu0 %v1253
        %2641 = vmatmul.mubr.bf16.gmra.mrb[0].mxu0 %v741
        %v2642 = vpop.f32.mrb[0].mxu0
        %v2643 = vadd.f32 %v2546, %v2642
        %v2644 = vpop.f32.mrb[0].mxu0
        %v2645 = vpop.f32.mrb[0].mxu0
        %v2646 = vadd.f32 %v2549, %v2645
        %v2647 = vpop.f32.mrb[0].mxu0
        %2648 = vmatprep.mubr.bf16.mxu0 %v1264
        %2649 = vmatmul.mubr.bf16.gmra.mrb[0].mxu0 %v756
        %v2650 = vpop.f32.mrb[0].mxu0
        %v2651 = vadd.f32 %v2554, %v2650
        %v2652 = vpop.f32.mrb[0].mxu0
        %v2653 = vpop.f32.mrb[0].mxu0
        %v2654 = vadd.f32 %v2557, %v2653
        %v2655 = vpop.f32.mrb[0].mxu0
        %2656 = vmatprep.mubr.bf16.mxu0 %v2212
        %2657 = vmatmul.mubr.bf16.gmra.mrb[0].mxu0 %v1740
        %v2658 = vpop.f32.mrb[0].mxu0
        %v2659 = vadd.f32 %v2562, %v2658
        %v2660 = vpop.f32.mrb[0].mxu0
        %v2661 = vpop.f32.mrb[0].mxu0
        %v2662 = vadd.f32 %v2565, %v2661
        %v2663 = vpop.f32.mrb[0].mxu0
        %2664 = vdwg.mxu0
        %s2665 = scalar_lea.vmem %s270, 384 [#allocation2]
        %2666 = vst [vmem:[%s2665] sm:$0xff] %v2603
        %2667 = vst [vmem:[%s2665 + $0x8] sm:$0xff] %v2606
        %2668 = vst [vmem:[%s2665 + $0x10] sm:$0xff] %v2611
        %2669 = vst [vmem:[%s2665 + $0x18] sm:$0xff] %v2614
        %2670 = vst [vmem:[%s2665 + $0x20] sm:$0xff] %v2619
        %2671 = vst [vmem:[%s2665 + $0x28] sm:$0xff] %v2622
        %2672 = vst [vmem:[%s2665 + $0x30] sm:$0xff] %v2627
        %2673 = vst [vmem:[%s2665 + $0x38] sm:$0xff] %v2630
        %2674 = vst [vmem:[%s2665 + $0x40] sm:$0xff] %v2635
        %2675 = vst [vmem:[%s2665 + $0x48] sm:$0xff] %v2638
        %2676 = vst [vmem:[%s2665 + $0x50] sm:$0xff] %v2643
        %2677 = vst [vmem:[%s2665 + $0x58] sm:$0xff] %v2646
        %2678 = vst [vmem:[%s2665 + $0x60] sm:$0xff] %v2651
        %2679 = vst [vmem:[%s2665 + $0x68] sm:$0xff] %v2654
        %2680 = vst [vmem:[%s2665 + $0x70] sm:$0xff] %v2659
        %2681 = vst [vmem:[%s2665 + $0x78] sm:$0xff] %v2662
        %s2682 = sand.u32 %s142, 1
        %s2683 = scalar_lea.sflag [#allocation3], %s2682
        %s2684 = sand.u32 %s142, 1
        %s2685 = smul.addr %s2684, 512
        %s2686 = scalar_lea.vmem [#allocation2], %s2685
        // Predicated region
        $region37: #{tpu_custom_call.1} parent=35 // pred_check
          %p2687 = pneg %p152
        $region38: #{tpu_custom_call.1} parent=35 // pred_check_branch
          %2689 = sbr.rel (%p2687) target = $region40
        $region39: #{tpu_custom_call.1} parent=35 // pred_region
          #allocation5 [shape = 'u32[6]{0}', space=smem, size = 0x18, scoped, tag = 'DMA stride descriptor']
          %s2690 = smul.u32 8, %s23
          %s2692 = ssub.s32 8192, 8192
          %2693 = vsyncadd %s2683, %s2692
          %s2694 = smul.addr %s2690, 2
          %s2695 = smul.addr %s22, 128
          %s2696 = sadd.s32 %s2694, %s2695
          %s2697 = smul.addr %s2696, 128
          %s2698 = scalar_lea.hbm %s4, %s2697
          %s2700 = sshll.u32 1, 14
          %s2701 = sxor.u32 4294967295, %s2700
          %s2704 = sshll.u32 7, 18
          %s2705 = sxor.u32 4294967295, %s2704
          %s2706 = sand.u32 0, %s2705
          %s2708 = sor.u32 %s2706, 0
          %s2710 = sshll.u32 3, 24
          %s2711 = sxor.u32 4294967295, %s2710
          %s2712 = sand.u32 %s2708, %s2711
          %s2714 = sor.u32 %s2712, 0
          %s2715 = sshll.u32 %s2686, 4
          %s2716 = int_to_ptr.vmem [resolvable:$true] %s2715
          %2722 = sst [smem:[#allocation5]] 2048
          %s2723 = scalar_lea.smem [#allocation5], 1
          %2724 = sst [smem:[%s2723]] 4096
          %s2725 = scalar_lea.smem [#allocation5], 2
          %2726 = sst [smem:[%s2725]] 16
          %s2727 = scalar_lea.smem [#allocation5], 3
          %2728 = sst [smem:[%s2727]] 128
          %s2729 = scalar_lea.smem [#allocation5], 4
          %2730 = sst [smem:[%s2729]] 128
          %s2731 = scalar_lea.smem [#allocation5], 5
          %2732 = sst [smem:[%s2731]] 8
          %2734 = dma.general %s2716, 8192, %s2698, %s2683, [#allocation4], [#allocation5], %s2714, 0
        $region40: #{tpu_custom_call.1} parent=35 // pred_fallthru
          _
      $region36: #{tpu_custom_call.1} parent=5 // pred_fallthru
        _
      %p2735 = scmp.le.s32.totalorder 2, %s13
      // Predicated region
      $region41: #{tpu_custom_call.1} parent=5 // pred_check
        %p2736 = pneg %p2735
      $region42: #{tpu_custom_call.1} parent=5 // pred_check_branch
        %2738 = sbr.rel (%p2736) target = $region44
      $region43: #{tpu_custom_call.1} parent=5 // pred_region
        %s2739 = ssub.s32 %s13, 2
        // Predicated region
        $region45: #{tpu_custom_call.1} parent=43 // pred_check
          %p2740 = pneg %p158
        $region46: #{tpu_custom_call.1} parent=43 // pred_check_branch
          %2742 = sbr.rel (%p2740) target = $region48
        $region47: #{tpu_custom_call.1} parent=43 // pred_region
          %s2743 = sand.u32 %s143, 1
          %s2744 = scalar_lea.sflag [#allocation3], %s2743
          %s2745 = sand.u32 %s143, 1
          %s2746 = smul.addr %s2745, 512
          %s2747 = scalar_lea.vmem [#allocation2], %s2746
          %2748 = dma.done %s2744, 8192
        $region48: #{tpu_custom_call.1} parent=43 // pred_fallthru
          _
      $region44: #{tpu_custom_call.1} parent=5 // pred_fallthru
        _
    $region6: #{tpu_custom_call.1} parent=1 // loop_footer
      %s17 = sadd.s32 1, %s13
    $region7: #{tpu_custom_call.1} parent=1 // loop_footer_branch
      %12 = sbr.rel target = $region3
    $region8: #{tpu_custom_call.1} parent=1 // loop_exit
      _
    %2749 = vsyncpa [#allocation3], 1
    %s2750 = scalar_lea.sflag [#allocation3], 1
    %2751 = vsyncpa %s2750, 1

</llo_original>
